<compile_context>
chip_gen: v7x
topology: tpu7x:2x2x1
jax: 0.10.0
libtpu: 0.0.40
codegen_flags: <defaults>
</compile_context>

<pallas_src>
import functools

import jax
import jax.numpy as jnp
from jax.experimental import pallas as pl
from jax.experimental.pallas import tpu as pltpu

LANE = 128
MATMUL_DTYPE = jnp.bfloat16   # narrow dtype for the A / x / weight leaf streams


def _round_up(x, m):
    return ((x + m - 1) // m) * m


def _choose_tiles(Np):
    """Pick (dst_tile, src_tile) for a node count Np (multiple of 128)."""
    assert Np % LANE == 0
    tk = max(t for t in (512, 256, 128) if Np % t == 0)   # src / contraction (lanes of A)
    tm = max(t for t in (256, 128, 64) if Np % t == 0)    # dst rows (sublanes of A)
    # keep >= 2 dst tiles so the "parallel" axis can shard across TensorCores (v7x)
    while Np // tm < 2 and tm > 64:
        tm //= 2
    return tm, tk


# ---------------------------------------------------------------------------
# Kernel 1: one HeteroGraphConv(SAGEConv mean, aggregate='sum') layer.
#   grid = (dst_tiles, relations, src_tiles); output tile resident across (r, k).
# ---------------------------------------------------------------------------
def _hetero_sage_layer_kernel(a_ref, hk_ref, wn_ref, hm_ref, ws_ref, b_ref,
                              out_ref, nacc_ref, *, apply_relu):
    r = pl.program_id(1)
    k = pl.program_id(2)
    nr = pl.num_programs(1)
    nk = pl.num_programs(2)

    # Hoisted self path + summed bias: exactly once per output tile.
    @pl.when((r == 0) & (k == 0))
    def _():
        out_ref[...] = (jnp.dot(hm_ref[...], ws_ref[...],
                                preferred_element_type=jnp.float32)
                        + b_ref[...])

    # Neighbor mean-aggregation for relation r, accumulated over src (k) tiles.
    # deg_inv is already folded into a_ref (A_norm), so this is a single matmul.
    @pl.when(k == 0)
    def _():
        nacc_ref[...] = jnp.zeros_like(nacc_ref)

    nacc_ref[...] += jnp.dot(a_ref[0], hk_ref[...],
                             preferred_element_type=jnp.float32)

    # Apply this relation's W_neigh once per relation (after the k reduction),
    # so the (tm, Din) x (Din, Dout) matmul is not repeated per src tile.
    @pl.when(k == nk - 1)
    def _():
        out_ref[...] += jnp.dot(nacc_ref[...], wn_ref[0],
                                preferred_element_type=jnp.float32)

    if apply_relu:
        @pl.when((r == nr - 1) & (k == nk - 1))
        def _():
            out_ref[...] = jnp.maximum(out_ref[...], 0.0)


def hetero_sage_layer(A_norm, H, W_neigh, W_self_sum, bias_sum, *, apply_relu):
    """One relational SAGE layer on padded, lane-aligned inputs.

    A_norm:     (R, Np, Np)  bf16, row-normalized adjacency (deg_inv folded in)
    H:          (Np, Din)    bf16 (layer 1 leaf) or f32 (intermediate)
    W_neigh:    (R, Din, Dout)
    W_self_sum: (Din, Dout)  = sum_r W_self_r
    bias_sum:   (1, Dout)    = sum_r bias_r
    returns:    (Np, Dout)   f32
    """
    R, Np, _ = A_norm.shape
    Din = H.shape[1]
    Dout = W_self_sum.shape[1]
    tm, tk = _choose_tiles(Np)

    kernel = functools.partial(_hetero_sage_layer_kernel, apply_relu=apply_relu)
    return pl.pallas_call(
        kernel,
        out_shape=jax.ShapeDtypeStruct((Np, Dout), jnp.float32),
        grid_spec=pltpu.PrefetchScalarGridSpec(
            num_scalar_prefetch=0,
            grid=(Np // tm, R, Np // tk),
            in_specs=[
                pl.BlockSpec((1, tm, tk), lambda i, r, k: (r, i, k)),     # A_norm tile
                pl.BlockSpec((tk, Din), lambda i, r, k: (k, 0)),          # H src rows
                pl.BlockSpec((1, Din, Dout), lambda i, r, k: (r, 0, 0)),  # W_neigh[r]
                pl.BlockSpec((tm, Din), lambda i, r, k: (i, 0)),          # H dst rows (self)
                pl.BlockSpec((Din, Dout), lambda i, r, k: (0, 0)),        # sum_r W_self
                pl.BlockSpec((1, Dout), lambda i, r, k: (0, 0)),          # sum_r bias
            ],
            out_specs=pl.BlockSpec((tm, Dout), lambda i, r, k: (i, 0)),
            scratch_shapes=[pltpu.VMEM((tm, Din), jnp.float32)],          # neigh accumulator
        ),
        compiler_params=pltpu.CompilerParams(
            dimension_semantics=("parallel", "arbitrary", "arbitrary"),
            vmem_limit_bytes=64 * 1024 * 1024),
    )(A_norm, H, W_neigh, H, W_self_sum, bias_sum)


# ---------------------------------------------------------------------------
# Kernel 2: per-edge dot product (u_dot_v), lane-dense.
#   features on sublanes, edges on lanes -> output (1, E_pad), pos+neg fused.
# ---------------------------------------------------------------------------
def _edge_score_kernel(hu_ref, hv_ref, o_ref):
    o_ref[...] = jnp.sum(hu_ref[...] * hv_ref[...], axis=0, keepdims=True)


def edge_scores(h, src_ids, dst_ids, *, te=LANE):
    # TODO(synk): for large E, scalar-prefetch src/dst ids and gather rows of h
    # with in-kernel DMA instead of materializing hu/hv via jnp.take in HBM.
    D = h.shape[1]
    E = src_ids.shape[0]
    Ep = _round_up(max(E, 1), te)
    src_p = jnp.pad(src_ids, (0, Ep - E))
    dst_p = jnp.pad(dst_ids, (0, Ep - E))
    hu_t = jnp.take(h, src_p, axis=0).T    # (D, Ep): edges on lanes
    hv_t = jnp.take(h, dst_p, axis=0).T
    out = pl.pallas_call(
        _edge_score_kernel,
        out_shape=jax.ShapeDtypeStruct((1, Ep), jnp.float32),
        grid=(Ep // te,),
        in_specs=[pl.BlockSpec((D, te), lambda e: (0, e)),
                  pl.BlockSpec((D, te), lambda e: (0, e))],
        out_specs=pl.BlockSpec((1, te), lambda e: (0, e)),
        compiler_params=pltpu.CompilerParams(
            dimension_semantics=("parallel",)),
    )(hu_t, hv_t)
    return out[0, :E].reshape(E, 1)


# ---------------------------------------------------------------------------
# One-time preprocessing: fold deg_inv into A, hoist/sum self weights & biases,
# pad everything to lane-dense (128-aligned) shapes, cast leaf streams to bf16.
# ---------------------------------------------------------------------------
def prepare_inputs(params, A, deg_inv, x):
    R, N, _ = A.shape
    Din, Dh = params["w_self1"].shape[1], params["w_self1"].shape[2]
    Dout = params["w_self2"].shape[2]
    Np = _round_up(N, LANE)
    Din_p, Dh_p, Dout_p = (_round_up(d, LANE) for d in (Din, Dh, Dout))

    A_norm = jnp.zeros((R, Np, Np), jnp.float32).at[:, :N, :N].set(A * deg_inv)
    A_norm = A_norm.astype(MATMUL_DTYPE)

    x_p = jnp.zeros((Np, Din_p), jnp.float32).at[:N, :Din].set(x).astype(MATMUL_DTYPE)

    def pad_rel(w, di, do):
        return jnp.zeros((w.shape[0], di, do), jnp.float32).at[
            :, :w.shape[1], :w.shape[2]].set(w)

    wn1 = pad_rel(params["w_neigh1"], Din_p, Dh_p).astype(MATMUL_DTYPE)
    wn2 = pad_rel(params["w_neigh2"], Dh_p, Dout_p).astype(MATMUL_DTYPE)
    # sum_r (h @ Ws_r) == h @ (sum_r Ws_r): hoist the self matmul out of the loop
    ws1 = jnp.sum(pad_rel(params["w_self1"], Din_p, Dh_p), axis=0).astype(MATMUL_DTYPE)
    ws2 = jnp.sum(pad_rel(params["w_self2"], Dh_p, Dout_p), axis=0).astype(MATMUL_DTYPE)
    b1 = jnp.zeros((1, Dh_p), jnp.float32).at[0, :Dh].set(jnp.sum(params["b1"], axis=0))
    b2 = jnp.zeros((1, Dout_p), jnp.float32).at[0, :Dout].set(jnp.sum(params["b2"], axis=0))

    return dict(A_norm=A_norm, x=x_p, wn1=wn1, ws1=ws1, b1=b1,
                wn2=wn2, ws2=ws2, b2=b2)


@functools.partial(jax.jit, static_argnames=("n_pos",))
def graphsage_forward(prep, src_ids, dst_ids, *, n_pos):
    A_norm = prep["A_norm"]
    h = hetero_sage_layer(A_norm, prep["x"], prep["wn1"], prep["ws1"], prep["b1"],
                          apply_relu=True)
    # intermediate activations kept f32; cast to MATMUL_DTYPE here for the full
    # bf16 MXU path if ~1e-2 relative error is acceptable.
    h = hetero_sage_layer(A_norm, h, prep["wn2"], prep["ws2"], prep["b2"],
                          apply_relu=False)
    scores = edge_scores(h, src_ids, dst_ids)     # pos + neg graphs in one launch
    return scores[:n_pos], scores[n_pos:]


# TODO(synk): for genuinely sparse graphs, replace the dense per-relation A with a
# CSR/edge-list aggregation kernel (scalar-prefetched row offsets + gather-accumulate).

if __name__ == "__main__":
    # small shapes: 16 'user' nodes, 2 relations among them, in=8, hidden=16, out=8
    N, R = 16, 2
    IN_F, HID_F, OUT_F = 8, 16, 8
    E_PER_REL = 24

    key = jax.random.PRNGKey(0)
    (k_x, k_edges, k_neg, k_ws1, k_wn1, k_b1, k_ws2, k_wn2, k_b2) = \
        jax.random.split(key, 9)

    # synthetic heterograph: relations r in {0, 1} over the single 'user' node type
    edges = jax.random.randint(k_edges, (R, 2, E_PER_REL), 0, N, dtype=jnp.int32)
    A = jnp.zeros((R, N, N), jnp.float32)
    for r in range(R):
        src, dst = edges[r, 0], edges[r, 1]
        # A[r, dst, src] accumulates multiplicity, matching DGL multigraph sum/mean
        A = A.at[r, dst, src].add(1.0)
    deg = jnp.sum(A, axis=2, keepdims=True)                 # (R, N, 1) in-degrees
    deg_inv = 1.0 / jnp.maximum(deg, 1.0)

    # positive graph edges for etype = relation 0; negative graph = corrupted dst
    pos_edges = (edges[0, 0], edges[0, 1])
    neg_dst = jax.random.randint(k_neg, (E_PER_REL,), 0, N, dtype=jnp.int32)
    neg_edges = (edges[0, 0], neg_dst)

    # node features (single node type 'user')
    x = jax.random.normal(k_x, (N, IN_F), jnp.float32)

    def init_w(k, shape, fan_in):
        return jax.random.normal(k, shape, jnp.float32) * (1.0 / jnp.sqrt(fan_in))

    params = {
        "w_self1": init_w(k_ws1, (R, IN_F, HID_F), IN_F),
        "w_neigh1": init_w(k_wn1, (R, IN_F, HID_F), IN_F),
        "b1": 0.1 * jax.random.normal(k_b1, (R, HID_F), jnp.float32),
        "w_self2": init_w(k_ws2, (R, HID_F, OUT_F), HID_F),
        "w_neigh2": init_w(k_wn2, (R, HID_F, OUT_F), HID_F),
        "b2": 0.1 * jax.random.normal(k_b2, (R, OUT_F), jnp.float32),
    }

    prep = prepare_inputs(params, A, deg_inv, x)
    src_all = jnp.concatenate([pos_edges[0], neg_edges[0]])
    dst_all = jnp.concatenate([pos_edges[1], neg_edges[1]])

    pos_score, neg_score = graphsage_forward(prep, src_all, dst_all, n_pos=E_PER_REL)
    jax.block_until_ready((pos_score, neg_score))

    assert pos_score.shape == (E_PER_REL, 1) and neg_score.shape == (E_PER_REL, 1)

    # Pure-JAX reference of the whole forward, with the SAME leaf-level bf16
    # rounding of A_norm / x / weights (intermediates stay f32 in both paths),
    # so only f32 accumulation-order noise separates kernel and reference.
    def ref_forward():
        bf16 = MATMUL_DTYPE
        A_nrm = (A * deg_inv).astype(bf16)
        h = x.astype(bf16)
        for ws, wn, b, act in [
            (params["w_self1"], params["w_neigh1"], params["b1"], True),
            (params["w_self2"], params["w_neigh2"], params["b2"], False),
        ]:
            ws_sum = jnp.sum(ws, axis=0).astype(bf16)
            wn_b = wn.astype(bf16)
            out = (jnp.dot(h, ws_sum, preferred_element_type=jnp.float32)
                   + jnp.sum(b, axis=0)[None, :])
            for r in range(R):
                neigh = jnp.dot(A_nrm[r], h, preferred_element_type=jnp.float32)
                out = out + jnp.dot(neigh, wn_b[r],
                                    preferred_element_type=jnp.float32)
            h = jnp.maximum(out, 0.0) if act else out       # f32 intermediate
        p = jnp.sum(h[pos_edges[0]] * h[pos_edges[1]], -1, keepdims=True)
        n = jnp.sum(h[neg_edges[0]] * h[neg_edges[1]], -1, keepdims=True)
        return p, n

    ref_p, ref_n = ref_forward()
    assert jnp.all(jnp.isfinite(pos_score)) and jnp.all(jnp.isfinite(neg_score))
    assert jnp.allclose(pos_score, ref_p, atol=1e-3, rtol=1e-3)
    assert jnp.allclose(neg_score, ref_n, atol=1e-3, rtol=1e-3)

    print("KERNEL_OK")
</pallas_src>

<mosaic_0001>
module attributes {stable_mosaic.version = 11 : i64} {
  func.func @_hetero_sage_layer_kernel(%arg0: i32, %arg1: i32, %arg2: i32, %arg3: memref<1x64x128xbf16, #tpu.memory_space<vmem>>, %arg4: memref<128x128xbf16, #tpu.memory_space<vmem>>, %arg5: memref<1x128x128xbf16, #tpu.memory_space<vmem>>, %arg6: memref<64x128xbf16, #tpu.memory_space<vmem>>, %arg7: memref<128x128xbf16, #tpu.memory_space<vmem>>, %arg8: memref<1x128xf32, #tpu.memory_space<vmem>>, %arg9: memref<64x128xf32, #tpu.memory_space<vmem>>, %arg10: memref<64x128xf32, #tpu.memory_space<vmem>>) attributes {dimension_semantics = [#tpu.dimension_semantics<parallel>, #tpu.dimension_semantics<arbitrary>, #tpu.dimension_semantics<arbitrary>], iteration_bounds = array<i64: 2, 2, 1>, scalar_prefetch = 0 : i64, scratch_operands = 1 : i64, tpu.core_type = #tpu.core_type<tc>, window_params = [{transform_indices = @transform_0, window_bounds = array<i64: 1, 64, 128>}, {transform_indices = @transform_1, window_bounds = array<i64: 128, 128>}, {transform_indices = @transform_2, window_bounds = array<i64: 1, 128, 128>}, {transform_indices = @transform_3, window_bounds = array<i64: 64, 128>}, {pipeline_mode = #tpu.pipeline_mode<synchronous>, transform_indices = @transform_4, window_bounds = array<i64: 128, 128>}, {pipeline_mode = #tpu.pipeline_mode<synchronous>, transform_indices = @transform_5, window_bounds = array<i64: 1, 128>}, {transform_indices = @transform_6, window_bounds = array<i64: 64, 128>}]} {
    %c0_i32 = arith.constant 0 : i32
    %0 = arith.cmpi eq, %arg1, %c0_i32 : i32
    %c0_i32_0 = arith.constant 0 : i32
    %1 = arith.cmpi eq, %arg2, %c0_i32_0 : i32
    %2 = arith.andi %0, %1 : i1
    %3 = arith.extui %2 : i1 to i32
    %c0_i32_1 = arith.constant 0 : i32
    %4 = arith.cmpi ne, %3, %c0_i32_1 : i32
    scf.if %4 {
      %c0_16 = arith.constant 0 : index
      %c0_17 = arith.constant 0 : index
      %23 = vector.load %arg6[%c0_16, %c0_17] : memref<64x128xbf16, #tpu.memory_space<vmem>>, vector<64x128xbf16>
      %c0_18 = arith.constant 0 : index
      %c0_19 = arith.constant 0 : index
      %24 = vector.load %arg7[%c0_18, %c0_19] : memref<128x128xbf16, #tpu.memory_space<vmem>>, vector<128x128xbf16>
      %cst_20 = arith.constant dense<0.000000e+00> : vector<64x128xf32>
      %25 = tpu.matmul %23, %24, %cst_20 {dimension_numbers = #tpu.dot_dimension_numbers<[1], [0], [0], [1], [0, 0, 1, 1], [], []>} : vector<64x128xbf16>, vector<128x128xbf16>, vector<64x128xf32> -> vector<64x128xf32>
      %c0_21 = arith.constant 0 : index
      %c0_22 = arith.constant 0 : index
      %26 = vector.load %arg8[%c0_21, %c0_22] : memref<1x128xf32, #tpu.memory_space<vmem>>, vector<1x128xf32>
      %27 = vector.broadcast %26 : vector<1x128xf32> to vector<64x128xf32>
      %28 = arith.addf %25, %27 : vector<64x128xf32>
      %c0_23 = arith.constant 0 : index
      %c0_24 = arith.constant 0 : index
      %29 = vector.load %arg9[%c0_23, %c0_24] : memref<64x128xf32, #tpu.memory_space<vmem>>, vector<64x128xf32>
      tpu.vector_store %arg9[%c0_23, %c0_24], %28 {strides = array<i32>} : memref<64x128xf32, #tpu.memory_space<vmem>>, vector<64x128xf32>,
    } else {
    }
    %c0_i32_2 = arith.constant 0 : i32
    %5 = arith.cmpi eq, %arg2, %c0_i32_2 : i32
    %6 = arith.extui %5 : i1 to i32
    %c0_i32_3 = arith.constant 0 : i32
    %7 = arith.cmpi ne, %6, %c0_i32_3 : i32
    scf.if %7 {
      %cst_16 = arith.constant 0.000000e+00 : f32
      %23 = vector.broadcast %cst_16 : f32 to vector<64x128xf32>
      %c0_17 = arith.constant 0 : index
      %c0_18 = arith.constant 0 : index
      %24 = vector.load %arg10[%c0_17, %c0_18] : memref<64x128xf32, #tpu.memory_space<vmem>>, vector<64x128xf32>
      tpu.vector_store %arg10[%c0_17, %c0_18], %23 {strides = array<i32>} : memref<64x128xf32, #tpu.memory_space<vmem>>, vector<64x128xf32>,
    } else {
    }
    %c0 = arith.constant 0 : index
    %c0_4 = arith.constant 0 : index
    %8 = vector.load %arg10[%c0, %c0_4] : memref<64x128xf32, #tpu.memory_space<vmem>>, vector<64x128xf32>
    %c0_5 = arith.constant 0 : index
    %c0_6 = arith.constant 0 : index
    %c0_7 = arith.constant 0 : index
    %9 = vector.load %arg3[%c0_5, %c0_6, %c0_7] : memref<1x64x128xbf16, #tpu.memory_space<vmem>>, vector<1x64x128xbf16>
    %10 = vector.shape_cast %9 : vector<1x64x128xbf16> to vector<64x128xbf16>
    %c0_8 = arith.constant 0 : index
    %c0_9 = arith.constant 0 : index
    %11 = vector.load %arg4[%c0_8, %c0_9] : memref<128x128xbf16, #tpu.memory_space<vmem>>, vector<128x128xbf16>
    %cst = arith.constant dense<0.000000e+00> : vector<64x128xf32>
    %12 = tpu.matmul %10, %11, %cst {dimension_numbers = #tpu.dot_dimension_numbers<[1], [0], [0], [1], [0, 0, 1, 1], [], []>} : vector<64x128xbf16>, vector<128x128xbf16>, vector<64x128xf32> -> vector<64x128xf32>
    %13 = arith.addf %8, %12 : vector<64x128xf32>
    %c0_10 = arith.constant 0 : index
    %c0_11 = arith.constant 0 : index
    %14 = vector.load %arg10[%c0_10, %c0_11] : memref<64x128xf32, #tpu.memory_space<vmem>>, vector<64x128xf32>
    tpu.vector_store %arg10[%c0_10, %c0_11], %13 {strides = array<i32>} : memref<64x128xf32, #tpu.memory_space<vmem>>, vector<64x128xf32>,
    %c0_i32_12 = arith.constant 0 : i32
    %15 = arith.cmpi eq, %arg2, %c0_i32_12 : i32
    %16 = arith.extui %15 : i1 to i32
    %c0_i32_13 = arith.constant 0 : i32
    %17 = arith.cmpi ne, %16, %c0_i32_13 : i32
    scf.if %17 {
      %c0_16 = arith.constant 0 : index
      %c0_17 = arith.constant 0 : index
      %23 = vector.load %arg9[%c0_16, %c0_17] : memref<64x128xf32, #tpu.memory_space<vmem>>, vector<64x128xf32>
      %c0_18 = arith.constant 0 : index
      %c0_19 = arith.constant 0 : index
      %24 = vector.load %arg10[%c0_18, %c0_19] : memref<64x128xf32, #tpu.memory_space<vmem>>, vector<64x128xf32>
      %c0_20 = arith.constant 0 : index
      %c0_21 = arith.constant 0 : index
      %c0_22 = arith.constant 0 : index
      %25 = vector.load %arg5[%c0_20, %c0_21, %c0_22] : memref<1x128x128xbf16, #tpu.memory_space<vmem>>, vector<1x128x128xbf16>
      %26 = vector.shape_cast %25 : vector<1x128x128xbf16> to vector<128x128xbf16>
      %cst_23 = arith.constant dense<0.000000e+00> : vector<64x128xf32>
      %27 = tpu.matmul %24, %26, %cst_23 {dimension_numbers = #tpu.dot_dimension_numbers<[1], [0], [0], [1], [0, 0, 1, 1], [], []>} : vector<64x128xf32>, vector<128x128xbf16>, vector<64x128xf32> -> vector<64x128xf32>
      %28 = arith.addf %23, %27 : vector<64x128xf32>
      %c0_24 = arith.constant 0 : index
      %c0_25 = arith.constant 0 : index
      %29 = vector.load %arg9[%c0_24, %c0_25] : memref<64x128xf32, #tpu.memory_space<vmem>>, vector<64x128xf32>
      tpu.vector_store %arg9[%c0_24, %c0_25], %28 {strides = array<i32>} : memref<64x128xf32, #tpu.memory_space<vmem>>, vector<64x128xf32>,
    } else {
    }
    %c1_i32 = arith.constant 1 : i32
    %18 = arith.cmpi eq, %arg1, %c1_i32 : i32
    %c0_i32_14 = arith.constant 0 : i32
    %19 = arith.cmpi eq, %arg2, %c0_i32_14 : i32
    %20 = arith.andi %18, %19 : i1
    %21 = arith.extui %20 : i1 to i32
    %c0_i32_15 = arith.constant 0 : i32
    %22 = arith.cmpi ne, %21, %c0_i32_15 : i32
    scf.if %22 {
      %c0_16 = arith.constant 0 : index
      %c0_17 = arith.constant 0 : index
      %23 = vector.load %arg9[%c0_16, %c0_17] : memref<64x128xf32, #tpu.memory_space<vmem>>, vector<64x128xf32>
      %cst_18 = arith.constant 0.000000e+00 : f32
      %24 = vector.broadcast %cst_18 : f32 to vector<64x128xf32>
      %25 = arith.maximumf %23, %24 : vector<64x128xf32>
      %c0_19 = arith.constant 0 : index
      %c0_20 = arith.constant 0 : index
      %26 = vector.load %arg9[%c0_19, %c0_20] : memref<64x128xf32, #tpu.memory_space<vmem>>, vector<64x128xf32>
      tpu.vector_store %arg9[%c0_19, %c0_20], %25 {strides = array<i32>} : memref<64x128xf32, #tpu.memory_space<vmem>>, vector<64x128xf32>,
    } else {
    }
    return
  }
  func.func @transform_0(%arg0: i32, %arg1: i32, %arg2: i32) -> (i32, i32, i32) {
    %c0_i32 = arith.constant 0 : i32
    return %arg1, %arg0, %arg2 : i32, i32, i32
  }
  func.func @transform_1(%arg0: i32, %arg1: i32, %arg2: i32) -> (i32, i32) {
    %c0_i32 = arith.constant 0 : i32
    %c0_i32_0 = arith.constant 0 : i32
    return %arg2, %c0_i32 : i32, i32
  }
  func.func @transform_2(%arg0: i32, %arg1: i32, %arg2: i32) -> (i32, i32, i32) {
    %c0_i32 = arith.constant 0 : i32
    %c0_i32_0 = arith.constant 0 : i32
    %c0_i32_1 = arith.constant 0 : i32
    return %arg1, %c0_i32, %c0_i32_0 : i32, i32, i32
  }
  func.func @transform_3(%arg0: i32, %arg1: i32, %arg2: i32) -> (i32, i32) {
    %c0_i32 = arith.constant 0 : i32
    %c0_i32_0 = arith.constant 0 : i32
    return %arg0, %c0_i32 : i32, i32
  }
  func.func @transform_4(%arg0: i32, %arg1: i32, %arg2: i32) -> (i32, i32) {
    %c0_i32 = arith.constant 0 : i32
    %c0_i32_0 = arith.constant 0 : i32
    %c0_i32_1 = arith.constant 0 : i32
    return %c0_i32, %c0_i32_0 : i32, i32
  }
  func.func @transform_5(%arg0: i32, %arg1: i32, %arg2: i32) -> (i32, i32) {
    %c0_i32 = arith.constant 0 : i32
    %c0_i32_0 = arith.constant 0 : i32
    %c0_i32_1 = arith.constant 0 : i32
    return %c0_i32, %c0_i32_0 : i32, i32
  }
  func.func @transform_6(%arg0: i32, %arg1: i32, %arg2: i32) -> (i32, i32) {
    %c0_i32 = arith.constant 0 : i32
    %c0_i32_0 = arith.constant 0 : i32
    return %arg0, %c0_i32 : i32, i32
  }
}

module attributes {stable_mosaic.version = 11 : i64} {
  func.func @_hetero_sage_layer_kernel(%arg0: i32, %arg1: i32, %arg2: i32, %arg3: memref<1x64x128xbf16, #tpu.memory_space<vmem>>, %arg4: memref<128x128xf32, #tpu.memory_space<vmem>>, %arg5: memref<1x128x128xbf16, #tpu.memory_space<vmem>>, %arg6: memref<64x128xf32, #tpu.memory_space<vmem>>, %arg7: memref<128x128xbf16, #tpu.memory_space<vmem>>, %arg8: memref<1x128xf32, #tpu.memory_space<vmem>>, %arg9: memref<64x128xf32, #tpu.memory_space<vmem>>, %arg10: memref<64x128xf32, #tpu.memory_space<vmem>>) attributes {dimension_semantics = [#tpu.dimension_semantics<parallel>, #tpu.dimension_semantics<arbitrary>, #tpu.dimension_semantics<arbitrary>], iteration_bounds = array<i64: 2, 2, 1>, scalar_prefetch = 0 : i64, scratch_operands = 1 : i64, tpu.core_type = #tpu.core_type<tc>, window_params = [{transform_indices = @transform_0, window_bounds = array<i64: 1, 64, 128>}, {transform_indices = @transform_1, window_bounds = array<i64: 128, 128>}, {transform_indices = @transform_2, window_bounds = array<i64: 1, 128, 128>}, {transform_indices = @transform_3, window_bounds = array<i64: 64, 128>}, {pipeline_mode = #tpu.pipeline_mode<synchronous>, transform_indices = @transform_4, window_bounds = array<i64: 128, 128>}, {pipeline_mode = #tpu.pipeline_mode<synchronous>, transform_indices = @transform_5, window_bounds = array<i64: 1, 128>}, {transform_indices = @transform_6, window_bounds = array<i64: 64, 128>}]} {
    %c0_i32 = arith.constant 0 : i32
    %0 = arith.cmpi eq, %arg1, %c0_i32 : i32
    %c0_i32_0 = arith.constant 0 : i32
    %1 = arith.cmpi eq, %arg2, %c0_i32_0 : i32
    %2 = arith.andi %0, %1 : i1
    %3 = arith.extui %2 : i1 to i32
    %c0_i32_1 = arith.constant 0 : i32
    %4 = arith.cmpi ne, %3, %c0_i32_1 : i32
    scf.if %4 {
      %c0_14 = arith.constant 0 : index
      %c0_15 = arith.constant 0 : index
      %18 = vector.load %arg6[%c0_14, %c0_15] : memref<64x128xf32, #tpu.memory_space<vmem>>, vector<64x128xf32>
      %c0_16 = arith.constant 0 : index
      %c0_17 = arith.constant 0 : index
      %19 = vector.load %arg7[%c0_16, %c0_17] : memref<128x128xbf16, #tpu.memory_space<vmem>>, vector<128x128xbf16>
      %cst_18 = arith.constant dense<0.000000e+00> : vector<64x128xf32>
      %20 = tpu.matmul %18, %19, %cst_18 {dimension_numbers = #tpu.dot_dimension_numbers<[1], [0], [0], [1], [0, 0, 1, 1], [], []>} : vector<64x128xf32>, vector<128x128xbf16>, vector<64x128xf32> -> vector<64x128xf32>
      %c0_19 = arith.constant 0 : index
      %c0_20 = arith.constant 0 : index
      %21 = vector.load %arg8[%c0_19, %c0_20] : memref<1x128xf32, #tpu.memory_space<vmem>>, vector<1x128xf32>
      %22 = vector.broadcast %21 : vector<1x128xf32> to vector<64x128xf32>
      %23 = arith.addf %20, %22 : vector<64x128xf32>
      %c0_21 = arith.constant 0 : index
      %c0_22 = arith.constant 0 : index
      %24 = vector.load %arg9[%c0_21, %c0_22] : memref<64x128xf32, #tpu.memory_space<vmem>>, vector<64x128xf32>
      tpu.vector_store %arg9[%c0_21, %c0_22], %23 {strides = array<i32>} : memref<64x128xf32, #tpu.memory_space<vmem>>, vector<64x128xf32>,
    } else {
    }
    %c0_i32_2 = arith.constant 0 : i32
    %5 = arith.cmpi eq, %arg2, %c0_i32_2 : i32
    %6 = arith.extui %5 : i1 to i32
    %c0_i32_3 = arith.constant 0 : i32
    %7 = arith.cmpi ne, %6, %c0_i32_3 : i32
    scf.if %7 {
      %cst_14 = arith.constant 0.000000e+00 : f32
      %18 = vector.broadcast %cst_14 : f32 to vector<64x128xf32>
      %c0_15 = arith.constant 0 : index
      %c0_16 = arith.constant 0 : index
      %19 = vector.load %arg10[%c0_15, %c0_16] : memref<64x128xf32, #tpu.memory_space<vmem>>, vector<64x128xf32>
      tpu.vector_store %arg10[%c0_15, %c0_16], %18 {strides = array<i32>} : memref<64x128xf32, #tpu.memory_space<vmem>>, vector<64x128xf32>,
    } else {
    }
    %c0 = arith.constant 0 : index
    %c0_4 = arith.constant 0 : index
    %8 = vector.load %arg10[%c0, %c0_4] : memref<64x128xf32, #tpu.memory_space<vmem>>, vector<64x128xf32>
    %c0_5 = arith.constant 0 : index
    %c0_6 = arith.constant 0 : index
    %c0_7 = arith.constant 0 : index
    %9 = vector.load %arg3[%c0_5, %c0_6, %c0_7] : memref<1x64x128xbf16, #tpu.memory_space<vmem>>, vector<1x64x128xbf16>
    %10 = vector.shape_cast %9 : vector<1x64x128xbf16> to vector<64x128xbf16>
    %c0_8 = arith.constant 0 : index
    %c0_9 = arith.constant 0 : index
    %11 = vector.load %arg4[%c0_8, %c0_9] : memref<128x128xf32, #tpu.memory_space<vmem>>, vector<128x128xf32>
    %cst = arith.constant dense<0.000000e+00> : vector<64x128xf32>
    %12 = tpu.matmul %10, %11, %cst {dimension_numbers = #tpu.dot_dimension_numbers<[1], [0], [0], [1], [0, 0, 1, 1], [], []>} : vector<64x128xbf16>, vector<128x128xf32>, vector<64x128xf32> -> vector<64x128xf32>
    %13 = arith.addf %8, %12 : vector<64x128xf32>
    %c0_10 = arith.constant 0 : index
    %c0_11 = arith.constant 0 : index
    %14 = vector.load %arg10[%c0_10, %c0_11] : memref<64x128xf32, #tpu.memory_space<vmem>>, vector<64x128xf32>
    tpu.vector_store %arg10[%c0_10, %c0_11], %13 {strides = array<i32>} : memref<64x128xf32, #tpu.memory_space<vmem>>, vector<64x128xf32>,
    %c0_i32_12 = arith.constant 0 : i32
    %15 = arith.cmpi eq, %arg2, %c0_i32_12 : i32
    %16 = arith.extui %15 : i1 to i32
    %c0_i32_13 = arith.constant 0 : i32
    %17 = arith.cmpi ne, %16, %c0_i32_13 : i32
    scf.if %17 {
      %c0_14 = arith.constant 0 : index
      %c0_15 = arith.constant 0 : index
      %18 = vector.load %arg9[%c0_14, %c0_15] : memref<64x128xf32, #tpu.memory_space<vmem>>, vector<64x128xf32>
      %c0_16 = arith.constant 0 : index
      %c0_17 = arith.constant 0 : index
      %19 = vector.load %arg10[%c0_16, %c0_17] : memref<64x128xf32, #tpu.memory_space<vmem>>, vector<64x128xf32>
      %c0_18 = arith.constant 0 : index
      %c0_19 = arith.constant 0 : index
      %c0_20 = arith.constant 0 : index
      %20 = vector.load %arg5[%c0_18, %c0_19, %c0_20] : memref<1x128x128xbf16, #tpu.memory_space<vmem>>, vector<1x128x128xbf16>
      %21 = vector.shape_cast %20 : vector<1x128x128xbf16> to vector<128x128xbf16>
      %cst_21 = arith.constant dense<0.000000e+00> : vector<64x128xf32>
      %22 = tpu.matmul %19, %21, %cst_21 {dimension_numbers = #tpu.dot_dimension_numbers<[1], [0], [0], [1], [0, 0, 1, 1], [], []>} : vector<64x128xf32>, vector<128x128xbf16>, vector<64x128xf32> -> vector<64x128xf32>
      %23 = arith.addf %18, %22 : vector<64x128xf32>
      %c0_22 = arith.constant 0 : index
      %c0_23 = arith.constant 0 : index
      %24 = vector.load %arg9[%c0_22, %c0_23] : memref<64x128xf32, #tpu.memory_space<vmem>>, vector<64x128xf32>
      tpu.vector_store %arg9[%c0_22, %c0_23], %23 {strides = array<i32>} : memref<64x128xf32, #tpu.memory_space<vmem>>, vector<64x128xf32>,
    } else {
    }
    return
  }
  func.func @transform_0(%arg0: i32, %arg1: i32, %arg2: i32) -> (i32, i32, i32) {
    %c0_i32 = arith.constant 0 : i32
    return %arg1, %arg0, %arg2 : i32, i32, i32
  }
  func.func @transform_1(%arg0: i32, %arg1: i32, %arg2: i32) -> (i32, i32) {
    %c0_i32 = arith.constant 0 : i32
    %c0_i32_0 = arith.constant 0 : i32
    return %arg2, %c0_i32 : i32, i32
  }
  func.func @transform_2(%arg0: i32, %arg1: i32, %arg2: i32) -> (i32, i32, i32) {
    %c0_i32 = arith.constant 0 : i32
    %c0_i32_0 = arith.constant 0 : i32
    %c0_i32_1 = arith.constant 0 : i32
    return %arg1, %c0_i32, %c0_i32_0 : i32, i32, i32
  }
  func.func @transform_3(%arg0: i32, %arg1: i32, %arg2: i32) -> (i32, i32) {
    %c0_i32 = arith.constant 0 : i32
    %c0_i32_0 = arith.constant 0 : i32
    return %arg0, %c0_i32 : i32, i32
  }
  func.func @transform_4(%arg0: i32, %arg1: i32, %arg2: i32) -> (i32, i32) {
    %c0_i32 = arith.constant 0 : i32
    %c0_i32_0 = arith.constant 0 : i32
    %c0_i32_1 = arith.constant 0 : i32
    return %c0_i32, %c0_i32_0 : i32, i32
  }
  func.func @transform_5(%arg0: i32, %arg1: i32, %arg2: i32) -> (i32, i32) {
    %c0_i32 = arith.constant 0 : i32
    %c0_i32_0 = arith.constant 0 : i32
    %c0_i32_1 = arith.constant 0 : i32
    return %c0_i32, %c0_i32_0 : i32, i32
  }
  func.func @transform_6(%arg0: i32, %arg1: i32, %arg2: i32) -> (i32, i32) {
    %c0_i32 = arith.constant 0 : i32
    %c0_i32_0 = arith.constant 0 : i32
    return %arg0, %c0_i32 : i32, i32
  }
}

module attributes {stable_mosaic.version = 11 : i64} {
  func.func @_edge_score_kernel(%arg0: i32, %arg1: memref<128x128xf32, #tpu.memory_space<vmem>>, %arg2: memref<128x128xf32, #tpu.memory_space<vmem>>, %arg3: memref<1x128xf32, #tpu.memory_space<vmem>>) attributes {dimension_semantics = [#tpu.dimension_semantics<parallel>], iteration_bounds = array<i64: 1>, scalar_prefetch = 0 : i64, scratch_operands = 0 : i64, tpu.core_type = #tpu.core_type<tc>, window_params = [{transform_indices = @transform_0, window_bounds = array<i64: 128, 128>}, {transform_indices = @transform_1, window_bounds = array<i64: 128, 128>}, {transform_indices = @transform_2, window_bounds = array<i64: 1, 128>}]} {
    %c0 = arith.constant 0 : index
    %c0_0 = arith.constant 0 : index
    %0 = vector.load %arg1[%c0, %c0_0] : memref<128x128xf32, #tpu.memory_space<vmem>>, vector<128x128xf32>
    %c0_1 = arith.constant 0 : index
    %c0_2 = arith.constant 0 : index
    %1 = vector.load %arg2[%c0_1, %c0_2] : memref<128x128xf32, #tpu.memory_space<vmem>>, vector<128x128xf32>
    %2 = arith.mulf %0, %1 : vector<128x128xf32>
    %cst = arith.constant dense<0.000000e+00> : vector<128xf32>
    %3 = vector.multi_reduction <add>, %2, %cst [0] : vector<128x128xf32> to vector<128xf32>
    %4 = vector.shape_cast %3 : vector<128xf32> to vector<1x128xf32>
    %c0_3 = arith.constant 0 : index
    %c0_4 = arith.constant 0 : index
    %5 = vector.load %arg3[%c0_3, %c0_4] : memref<1x128xf32, #tpu.memory_space<vmem>>, vector<1x128xf32>
    tpu.vector_store %arg3[%c0_3, %c0_4], %4 {strides = array<i32>} : memref<1x128xf32, #tpu.memory_space<vmem>>, vector<1x128xf32>,
    return
  }
  func.func @transform_0(%arg0: i32) -> (i32, i32) {
    %c0_i32 = arith.constant 0 : i32
    %c0_i32_0 = arith.constant 0 : i32
    return %c0_i32, %arg0 : i32, i32
  }
  func.func @transform_1(%arg0: i32) -> (i32, i32) {
    %c0_i32 = arith.constant 0 : i32
    %c0_i32_0 = arith.constant 0 : i32
    return %c0_i32, %arg0 : i32, i32
  }
  func.func @transform_2(%arg0: i32) -> (i32, i32) {
    %c0_i32 = arith.constant 0 : i32
    %c0_i32_0 = arith.constant 0 : i32
    return %c0_i32, %arg0 : i32, i32
  }
}

</mosaic_0001>

<llo_original>
// kernel: graphsage_forward.3
$region0: #{graphsage_forward.3}
  #allocation0 [shape = 'u32[]', space=smem, size = 0x4, offset = 0x4, fixed_abs, tag = 'smem constant byte address 0x4 - core index']
  #allocation1 [shape = 'u32[144,128]{1,0:T(1,128)}', space=vmem, size = 0x12000, scoped, tag = 'internal scratch']
  #allocation2 [shape = 'f32[64,128]{1,0:T(8,128)}', space=vmem, size = 0x8000, scoped, tag = 'scratch operand']
  %s0 = inlined_call_operand.hbm [shape: bf16[2,128,128], index: 0, kind: input, shape index: {}]
  %s1 = inlined_call_operand.hbm [shape: bf16[128,128], index: 1, kind: input, shape index: {}, may-alias: {1,3}]
  %s2 = inlined_call_operand.hbm [shape: bf16[2,128,128], index: 2, kind: input, shape index: {}]
  %s3 = inlined_call_operand.hbm [shape: bf16[128,128], index: 3, kind: input, shape index: {}, may-alias: {1,3}]
  %s4 = inlined_call_operand.hbm [shape: bf16[128,128], index: 4, kind: input, shape index: {}]
  %s5 = inlined_call_operand.hbm [shape: f32[1,128], index: 5, kind: input, shape index: {}]
  %s6 = inlined_call_operand.hbm [shape: f32[128,128], index: 6, kind: output, shape index: {}]
  %s7 = sld [smem:[#allocation0]]
  $region97: #{graphsage_forward.3} parent=0
    _
  %s9 = ssub.s32 1, %s7
  %s10 = scalar_select 0, %s9, %s7
  $region1: #{graphsage_forward.3} parent=0
    #allocation3 [shape = 'u8[32768]{0}', space=vmem, size = 0x8000, scoped, tag = 'input window, operand 0']
    #allocation4 [shape = 's32[2]{0}', space=sflag, size = 0x8, scoped, tag = 'scoped memory for graphsage_forward.3']
    #allocation5 [shape = 's32[2]{0}', space=sflag, size = 0x8, scoped, tag = 'scoped memory for graphsage_forward.3']
    #allocation6 [shape = 'u8[32768]{0}', space=vmem, size = 0x8000, scoped, tag = 'input window, operand 1, single buffered']
    #allocation7 [shape = 's32[1]{0}', space=sflag, size = 0x4, scoped, tag = 'scoped memory for graphsage_forward.3']
    #allocation8 [shape = 'u8[65536]{0}', space=vmem, size = 0x10000, scoped, tag = 'input window, operand 2']
    #allocation9 [shape = 'u8[32768]{0}', space=vmem, size = 0x8000, scoped, tag = 'input window, operand 3']
    #allocation10 [shape = 'u8[32768]{0}', space=vmem, size = 0x8000, scoped, tag = 'input window, operand 4, single buffered']
    #allocation11 [shape = 'u8[512]{0}', space=vmem, size = 0x400, scoped, tag = 'input window, operand 5, single buffered']
    #allocation12 [shape = 's32[1]{0}', space=sflag, size = 0x4, scoped, tag = 'scoped memory for graphsage_forward.3']
    #allocation13 [shape = 'u8[65536]{0}', space=vmem, size = 0x10000, scoped, tag = 'output window, operand 0']
    %11 = vsyncpa [#allocation4], 0
    %s12 = scalar_lea.sflag [#allocation4], 1
    %13 = vsyncpa %s12, 0
    %14 = vsyncpa [#allocation7], 0
    %15 = vsyncpa [#allocation12], 0
    %16 = vsyncpa [#allocation5], 0
    %s17 = scalar_lea.sflag [#allocation5], 1
    %18 = vsyncpa %s17, 0
    loop: start=0, step=1, limit=6
    $region2: #{graphsage_forward.3} parent=1 // loop_pre_header
      _
    $region3: #{graphsage_forward.3} parent=1 // loop_header
      %s20 = sphi 0, %s24
      %p21 = scmp.ge.s32.totalorder %s20, 6
      %s27 = sphi 0, %s46
      %s28 = sphi 0, %s42
      %s29 = sphi 0, %s38
      %s30 = sphi 0, %s27
      %s31 = sphi 0, %s28
      %s32 = sphi 0, %s29
      %s33 = sphi 0, %s30
      %s34 = sphi 0, %s31
      %s35 = sphi 0, %s32
      %s53 = sphi 0, %s55
      %s56 = sphi 0, %s53
      %s57 = sphi 0, %s56
      %s73 = sphi 0, %s57
      %s79 = sphi 0, %s81
      %s82 = sphi 0, %s79
      %s83 = sphi 0, %s82
      %s99 = sphi 0, %s83
      %s105 = sphi 0, %s107
      %s108 = sphi 0, %s105
      %s109 = sphi 0, %s108
      %s125 = sphi 0, %s109
      %s131 = sphi 0, %s133
      %s134 = sphi 0, %s131
      %s135 = sphi 0, %s134
      %s151 = sphi 0, %s135
      %s155 = sphi 0, %s155
      %s157 = sphi 0, %s155
      %s158 = sphi 0, %s157
      %s172 = sphi 0, %s158
      %s176 = sphi 0, %s176
      %s178 = sphi 0, %s176
      %s179 = sphi 0, %s178
      %s193 = sphi 0, %s179
      %s199 = sphi 0, %s201
      %s202 = sphi 0, %s199
      %s203 = sphi 0, %s202
      %s219 = sphi 0, %s203
    $region4: #{graphsage_forward.3} parent=1 // loop_header_branch
      %23 = sbr.rel (%p21) target = $region8
    $region5: #{graphsage_forward.3} parent=1 // loop_body
      %s25 = ssub.s32 %s20, 1
      %s26 = ssub.s32 %s20, 2
      %s36 = sadd.s32 1, %s29
      %p37 = scmp.ge.s32.totalorder %s36, 1
      %s38 = scalar_select %p37, 0, %s36
      %s39 = sadd.s32 1, %s28
      %s40 = scalar_select %p37, %s39, %s28
      %p41 = scmp.ge.s32.totalorder %s40, 2
      %s42 = scalar_select %p41, 0, %s40
      %s43 = sadd.s32 1, %s27
      %s44 = scalar_select %p41, %s43, %s27
      %p45 = scmp.ge.s32.totalorder %s44, 2
      %s46 = scalar_select %p45, 0, %s44
      %s47 = ssub.s32 %s28, %s42
      %s48 = ssub.s32 %s27, %s46
      %s49 = sor.u32 %s47, %s48
      %s50 = ssub.s32 %s29, %s38
      %s51 = sor.u32 %s49, %s50
      %p52 = scmp.eq.s32.totalorder %s51, 0
      %s54 = sadd.s32 %s53, 1
      %s55 = scalar_select %p52, %s53, %s54
      %p58 = pneg %p52
      %p59 = scmp.eq.s32.totalorder %s20, 3
      %p60 = por %p58, %p59
      %p61 = scmp.ne.s32.totalorder %s53, %s56
      %p62 = scmp.eq.s32.totalorder %s20, 0
      %p63 = por %p61, %p62
      %p64 = scmp.ne.s32.totalorder %s53, %s56
      %p65 = scmp.eq.s32.totalorder %s25, 3
      %p66 = por %p64, %p65
      %p67 = scmp.ne.s32.totalorder %s56, %s57
      %p68 = scmp.eq.s32.totalorder %s25, 0
      %p69 = por %p67, %p68
      %p70 = scmp.ne.s32.totalorder %s56, %s57
      %p71 = scmp.eq.s32.totalorder %s26, 3
      %p72 = por %p70, %p71
      %p74 = scmp.ne.s32.totalorder %s57, %s73
      %p75 = scmp.eq.s32.totalorder %s26, 0
      %p76 = por %p74, %p75
      %s77 = ssub.s32 %s29, %s38
      %p78 = scmp.eq.s32.totalorder %s77, 0
      %s80 = sadd.s32 %s79, 1
      %s81 = scalar_select %p78, %s79, %s80
      %p84 = pneg %p78
      %p85 = scmp.eq.s32.totalorder %s20, 3
      %p86 = por %p84, %p85
      %p87 = scmp.ne.s32.totalorder %s79, %s82
      %p88 = scmp.eq.s32.totalorder %s20, 0
      %p89 = por %p87, %p88
      %p90 = scmp.ne.s32.totalorder %s79, %s82
      %p91 = scmp.eq.s32.totalorder %s25, 3
      %p92 = por %p90, %p91
      %p93 = scmp.ne.s32.totalorder %s82, %s83
      %p94 = scmp.eq.s32.totalorder %s25, 0
      %p95 = por %p93, %p94
      %p96 = scmp.ne.s32.totalorder %s82, %s83
      %p97 = scmp.eq.s32.totalorder %s26, 3
      %p98 = por %p96, %p97
      %p100 = scmp.ne.s32.totalorder %s83, %s99
      %p101 = scmp.eq.s32.totalorder %s26, 0
      %p102 = por %p100, %p101
      %s103 = ssub.s32 %s28, %s42
      %p104 = scmp.eq.s32.totalorder %s103, 0
      %s106 = sadd.s32 %s105, 1
      %s107 = scalar_select %p104, %s105, %s106
      %p110 = pneg %p104
      %p111 = scmp.eq.s32.totalorder %s20, 3
      %p112 = por %p110, %p111
      %p113 = scmp.ne.s32.totalorder %s105, %s108
      %p114 = scmp.eq.s32.totalorder %s20, 0
      %p115 = por %p113, %p114
      %p116 = scmp.ne.s32.totalorder %s105, %s108
      %p117 = scmp.eq.s32.totalorder %s25, 3
      %p118 = por %p116, %p117
      %p119 = scmp.ne.s32.totalorder %s108, %s109
      %p120 = scmp.eq.s32.totalorder %s25, 0
      %p121 = por %p119, %p120
      %p122 = scmp.ne.s32.totalorder %s108, %s109
      %p123 = scmp.eq.s32.totalorder %s26, 3
      %p124 = por %p122, %p123
      %p126 = scmp.ne.s32.totalorder %s109, %s125
      %p127 = scmp.eq.s32.totalorder %s26, 0
      %p128 = por %p126, %p127
      %s129 = ssub.s32 %s27, %s46
      %p130 = scmp.eq.s32.totalorder %s129, 0
      %s132 = sadd.s32 %s131, 1
      %s133 = scalar_select %p130, %s131, %s132
      %p136 = pneg %p130
      %p137 = scmp.eq.s32.totalorder %s20, 3
      %p138 = por %p136, %p137
      %p139 = scmp.ne.s32.totalorder %s131, %s134
      %p140 = scmp.eq.s32.totalorder %s20, 0
      %p141 = por %p139, %p140
      %p142 = scmp.ne.s32.totalorder %s131, %s134
      %p143 = scmp.eq.s32.totalorder %s25, 3
      %p144 = por %p142, %p143
      %p145 = scmp.ne.s32.totalorder %s134, %s135
      %p146 = scmp.eq.s32.totalorder %s25, 0
      %p147 = por %p145, %p146
      %p148 = scmp.ne.s32.totalorder %s134, %s135
      %p149 = scmp.eq.s32.totalorder %s26, 3
      %p150 = por %p148, %p149
      %p152 = scmp.ne.s32.totalorder %s135, %s151
      %p153 = scmp.eq.s32.totalorder %s26, 0
      %p154 = por %p152, %p153
      %s156 = sadd.s32 %s155, 1
      %p159 = scmp.eq.s32.totalorder %s20, 3
      %p160 = scmp.ne.s32.totalorder %s155, %s157
      %p161 = scmp.eq.s32.totalorder %s20, 0
      %p162 = por %p160, %p161
      %p163 = scmp.ne.s32.totalorder %s155, %s157
      %p164 = scmp.eq.s32.totalorder %s25, 3
      %p165 = por %p163, %p164
      %p166 = scmp.ne.s32.totalorder %s157, %s158
      %p167 = scmp.eq.s32.totalorder %s25, 0
      %p168 = por %p166, %p167
      %p169 = scmp.ne.s32.totalorder %s157, %s158
      %p170 = scmp.eq.s32.totalorder %s26, 3
      %p171 = por %p169, %p170
      %p173 = scmp.ne.s32.totalorder %s158, %s172
      %p174 = scmp.eq.s32.totalorder %s26, 0
      %p175 = por %p173, %p174
      %s177 = sadd.s32 %s176, 1
      %p180 = scmp.eq.s32.totalorder %s20, 3
      %p181 = scmp.ne.s32.totalorder %s176, %s178
      %p182 = scmp.eq.s32.totalorder %s20, 0
      %p183 = por %p181, %p182
      %p184 = scmp.ne.s32.totalorder %s176, %s178
      %p185 = scmp.eq.s32.totalorder %s25, 3
      %p186 = por %p184, %p185
      %p187 = scmp.ne.s32.totalorder %s178, %s179
      %p188 = scmp.eq.s32.totalorder %s25, 0
      %p189 = por %p187, %p188
      %p190 = scmp.ne.s32.totalorder %s178, %s179
      %p191 = scmp.eq.s32.totalorder %s26, 3
      %p192 = por %p190, %p191
      %p194 = scmp.ne.s32.totalorder %s179, %s193
      %p195 = scmp.eq.s32.totalorder %s26, 0
      %p196 = por %p194, %p195
      %s197 = ssub.s32 %s27, %s46
      %p198 = scmp.eq.s32.totalorder %s197, 0
      %s200 = sadd.s32 %s199, 1
      %s201 = scalar_select %p198, %s199, %s200
      %p204 = pneg %p198
      %p205 = scmp.eq.s32.totalorder %s20, 3
      %p206 = por %p204, %p205
      %p207 = scmp.ne.s32.totalorder %s199, %s202
      %p208 = scmp.eq.s32.totalorder %s20, 0
      %p209 = por %p207, %p208
      %p210 = scmp.ne.s32.totalorder %s199, %s202
      %p211 = scmp.eq.s32.totalorder %s25, 3
      %p212 = por %p210, %p211
      %p213 = scmp.ne.s32.totalorder %s202, %s203
      %p214 = scmp.eq.s32.totalorder %s25, 0
      %p215 = por %p213, %p214
      %p216 = scmp.ne.s32.totalorder %s202, %s203
      %p217 = scmp.eq.s32.totalorder %s26, 3
      %p218 = por %p216, %p217
      %p220 = scmp.ne.s32.totalorder %s203, %s219
      %p221 = scmp.eq.s32.totalorder %s26, 0
      %p222 = por %p220, %p221
      %p223 = scmp.le.s32.totalorder 1, %s20
      %p224 = scmp.lt.s32.totalorder %s20, 5
      %p225 = pnand %p223, %p224
      %p226 = pneg %p225
      // Predicated region
      $region9: #{graphsage_forward.3} parent=5 // pred_check
        _
      $region10: #{graphsage_forward.3} parent=5 // pred_check_branch
        %228 = sbr.rel (%p225) target = $region12
      $region11: #{graphsage_forward.3} parent=5 // pred_region
        %s229 = ssub.s32 %s20, 1
        // Predicated region
        $region13: #{graphsage_forward.3} parent=11 // pred_check
          %p230 = pneg %p95
        $region14: #{graphsage_forward.3} parent=11 // pred_check_branch
          %232 = sbr.rel (%p230) target = $region16
        $region15: #{graphsage_forward.3} parent=11 // pred_region
          %s233 = smul.u32 16, %s32
          %s235 = ssub.s32 1024, 1024
          %236 = vsyncadd [#allocation7], %s235
          %s237 = smul.addr %s233, 64
          %s238 = scalar_lea.hbm %s1, %s237
          %s239 = sshll.u32 [#allocation6], 4
          %s240 = int_to_ptr.vmem [resolvable:$true] %s239
          %245 = dma.hbm_to_vmem [thread:$0]  %s238, 1024, %s240, [#allocation7], 64, 64, 4
        $region16: #{graphsage_forward.3} parent=11 // pred_fallthru
          _
        // Predicated region
        $region17: #{graphsage_forward.3} parent=11 // pred_check
          %p246 = pneg %p168
        $region18: #{graphsage_forward.3} parent=11 // pred_check_branch
          %248 = sbr.rel (%p246) target = $region20
        $region19: #{graphsage_forward.3} parent=11 // pred_region
          %s250 = ssub.s32 1024, 1024
          %251 = vsyncadd [#allocation7], %s250
          %s252 = sshll.u32 [#allocation10], 4
          %s253 = int_to_ptr.vmem [resolvable:$true] %s252
          %258 = dma.hbm_to_vmem [thread:$0]  %s4, 1024, %s253, [#allocation7], 64, 64, 4
        $region20: #{graphsage_forward.3} parent=11 // pred_fallthru
          _
        // Predicated region
        $region21: #{graphsage_forward.3} parent=11 // pred_check
          %p259 = pneg %p189
        $region22: #{graphsage_forward.3} parent=11 // pred_check_branch
          %261 = sbr.rel (%p259) target = $region24
        $region23: #{graphsage_forward.3} parent=11 // pred_region
          %s263 = ssub.s32 16, 16
          %264 = vsyncadd [#allocation12], %s263
          %s266 = sshll.u32 [#allocation11], 4
          %s267 = int_to_ptr.vmem [resolvable:$true] %s266
          %269 = dma.hbm_to_vmem [thread:$0]  %s5, 16, %s267, [#allocation12]
        $region24: #{graphsage_forward.3} parent=11 // pred_fallthru
          _
      $region12: #{graphsage_forward.3} parent=5 // pred_fallthru
        _
      %p270 = scmp.lt.s32.totalorder %s20, 4
      // Predicated region
      $region25: #{graphsage_forward.3} parent=5 // pred_check
        %p271 = pneg %p270
      $region26: #{graphsage_forward.3} parent=5 // pred_check_branch
        %273 = sbr.rel (%p271) target = $region28
      $region27: #{graphsage_forward.3} parent=5 // pred_region
        // Predicated region
        $region29: #{graphsage_forward.3} parent=27 // pred_check
          %p274 = pneg %p63
        $region30: #{graphsage_forward.3} parent=27 // pred_check_branch
          %276 = sbr.rel (%p274) target = $region32
        $region31: #{graphsage_forward.3} parent=27 // pred_region
          %s277 = sand.u32 %s20, 1
          %s278 = scalar_lea.sflag [#allocation4], %s277
          %s279 = sand.u32 %s53, 1
          %s280 = smul.addr %s279, 32
          %s281 = scalar_lea.vmem [#allocation3], %s280
          %s282 = smul.u32 8, %s27
          %s284 = ssub.s32 512, 512
          %285 = vsyncadd %s278, %s284
          %s286 = sadd.s32 %s29, %s282
          %s287 = smul.addr %s28, 16
          %s288 = sadd.s32 %s286, %s287
          %s289 = smul.addr %s288, 64
          %s290 = scalar_lea.hbm %s0, %s289
          %s291 = sshll.u32 %s281, 4
          %s292 = int_to_ptr.vmem [resolvable:$true] %s291
          %297 = dma.hbm_to_vmem [thread:$0]  %s290, 512, %s292, %s278, 64, 64, 4
        $region32: #{graphsage_forward.3} parent=27 // pred_fallthru
          _
        // Predicated region
        $region33: #{graphsage_forward.3} parent=27 // pred_check
          %p298 = pneg %p115
        $region34: #{graphsage_forward.3} parent=27 // pred_check_branch
          %300 = sbr.rel (%p298) target = $region36
        $region35: #{graphsage_forward.3} parent=27 // pred_region
          %s301 = sand.u32 %s20, 1
          %s302 = scalar_lea.sflag [#allocation4], %s301
          %s303 = sand.u32 %s105, 1
          %s304 = smul.addr %s303, 64
          %s305 = scalar_lea.vmem [#allocation8], %s304
          %s307 = ssub.s32 1024, 1024
          %308 = vsyncadd %s302, %s307
          %s309 = smul.addr %s28, 16
          %s310 = smul.addr %s309, 64
          %s311 = scalar_lea.hbm %s2, %s310
          %s312 = sshll.u32 %s305, 4
          %s313 = int_to_ptr.vmem [resolvable:$true] %s312
          %318 = dma.hbm_to_vmem [thread:$0]  %s311, 1024, %s313, %s302, 64, 64, 4
        $region36: #{graphsage_forward.3} parent=27 // pred_fallthru
          _
        // Predicated region
        $region37: #{graphsage_forward.3} parent=27 // pred_check
          %p319 = pneg %p141
        $region38: #{graphsage_forward.3} parent=27 // pred_check_branch
          %321 = sbr.rel (%p319) target = $region40
        $region39: #{graphsage_forward.3} parent=27 // pred_region
          %s322 = sand.u32 %s20, 1
          %s323 = scalar_lea.sflag [#allocation4], %s322
          %s324 = sand.u32 %s131, 1
          %s325 = smul.addr %s324, 32
          %s326 = scalar_lea.vmem [#allocation9], %s325
          %s327 = smul.u32 8, %s27
          %s329 = ssub.s32 512, 512
          %330 = vsyncadd %s323, %s329
          %s331 = smul.addr %s327, 64
          %s332 = scalar_lea.hbm %s3, %s331
          %s333 = sshll.u32 %s326, 4
          %s334 = int_to_ptr.vmem [resolvable:$true] %s333
          %339 = dma.hbm_to_vmem [thread:$0]  %s332, 512, %s334, %s323, 64, 64, 4
        $region40: #{graphsage_forward.3} parent=27 // pred_fallthru
          _
      $region28: #{graphsage_forward.3} parent=5 // pred_fallthru
        _
      %p340 = scmp.le.s32.totalorder 1, %s20
      %p341 = scmp.lt.s32.totalorder %s20, 5
      %p342 = pnand %p340, %p341
      %p343 = pneg %p342
      // Predicated region
      $region41: #{graphsage_forward.3} parent=5 // pred_check
        _
      $region42: #{graphsage_forward.3} parent=5 // pred_check_branch
        %345 = sbr.rel (%p342) target = $region44
      $region43: #{graphsage_forward.3} parent=5 // pred_region
        %s346 = ssub.s32 %s20, 1
        %s347 = sand.u32 %s25, 1
        %s348 = scalar_lea.sflag [#allocation4], %s347
        %s349 = sand.u32 %s56, 1
        %s350 = smul.addr %s349, 32
        %s351 = scalar_lea.vmem [#allocation3], %s350
        // Predicated region
        $region45: #{graphsage_forward.3} parent=43 // pred_check
          %p352 = pneg %p69
        $region46: #{graphsage_forward.3} parent=43 // pred_check_branch
          %354 = sbr.rel (%p352) target = $region48
        $region47: #{graphsage_forward.3} parent=43 // pred_region
          %355 = dma.done %s348, 512
        $region48: #{graphsage_forward.3} parent=43 // pred_fallthru
          _
        // Predicated region
        $region49: #{graphsage_forward.3} parent=43 // pred_check
          %p356 = pneg %p95
        $region50: #{graphsage_forward.3} parent=43 // pred_check_branch
          %358 = sbr.rel (%p356) target = $region52
        $region51: #{graphsage_forward.3} parent=43 // pred_region
          %359 = dma.done [#allocation7], 1024
        $region52: #{graphsage_forward.3} parent=43 // pred_fallthru
          _
        %s360 = sand.u32 %s25, 1
        %s361 = scalar_lea.sflag [#allocation4], %s360
        %s362 = sand.u32 %s108, 1
        %s363 = smul.addr %s362, 64
        %s364 = scalar_lea.vmem [#allocation8], %s363
        // Predicated region
        $region53: #{graphsage_forward.3} parent=43 // pred_check
          %p365 = pneg %p121
        $region54: #{graphsage_forward.3} parent=43 // pred_check_branch
          %367 = sbr.rel (%p365) target = $region56
        $region55: #{graphsage_forward.3} parent=43 // pred_region
          %368 = dma.done %s361, 1024
        $region56: #{graphsage_forward.3} parent=43 // pred_fallthru
          _
        %s369 = sand.u32 %s25, 1
        %s370 = scalar_lea.sflag [#allocation4], %s369
        %s371 = sand.u32 %s134, 1
        %s372 = smul.addr %s371, 32
        %s373 = scalar_lea.vmem [#allocation9], %s372
        // Predicated region
        $region57: #{graphsage_forward.3} parent=43 // pred_check
          %p374 = pneg %p147
        $region58: #{graphsage_forward.3} parent=43 // pred_check_branch
          %376 = sbr.rel (%p374) target = $region60
        $region59: #{graphsage_forward.3} parent=43 // pred_region
          %377 = dma.done %s370, 512
        $region60: #{graphsage_forward.3} parent=43 // pred_fallthru
          _
        // Predicated region
        $region61: #{graphsage_forward.3} parent=43 // pred_check
          %p378 = pneg %p168
        $region62: #{graphsage_forward.3} parent=43 // pred_check_branch
          %380 = sbr.rel (%p378) target = $region64
        $region63: #{graphsage_forward.3} parent=43 // pred_region
          %381 = dma.done [#allocation7], 1024
        $region64: #{graphsage_forward.3} parent=43 // pred_fallthru
          _
        // Predicated region
        $region65: #{graphsage_forward.3} parent=43 // pred_check
          %p382 = pneg %p189
        $region66: #{graphsage_forward.3} parent=43 // pred_check_branch
          %384 = sbr.rel (%p382) target = $region68
        $region67: #{graphsage_forward.3} parent=43 // pred_region
          %385 = dma.done [#allocation12], 16
        $region68: #{graphsage_forward.3} parent=43 // pred_fallthru
          _
        %s386 = sand.u32 %s25, 1
        %s387 = scalar_lea.sflag [#allocation4], %s386
        %s388 = sand.u32 %s56, 1
        %s389 = smul.addr %s388, 32
        %s390 = scalar_lea.vmem [#allocation3], %s389
        %p391 = pneg %p69
        %p392 = pneg %p66
        %p393 = pneg %p95
        %p394 = pneg %p92
        %s395 = sand.u32 %s25, 1
        %s396 = scalar_lea.sflag [#allocation4], %s395
        %s397 = sand.u32 %s108, 1
        %s398 = smul.addr %s397, 64
        %s399 = scalar_lea.vmem [#allocation8], %s398
        %p400 = pneg %p121
        %p401 = pneg %p118
        %s402 = sand.u32 %s25, 1
        %s403 = scalar_lea.sflag [#allocation4], %s402
        %s404 = sand.u32 %s134, 1
        %s405 = smul.addr %s404, 32
        %s406 = scalar_lea.vmem [#allocation9], %s405
        %p407 = pneg %p147
        %p408 = pneg %p144
        %p409 = pneg %p168
        %p410 = pneg %p165
        %p411 = pneg %p189
        %p412 = pneg %p186
        %p413 = pneg %p215
        %p414 = pneg %p212
        %s415 = sand.u32 %s202, 1
        %s416 = scalar_lea.sflag [#allocation5], %s415
        %s417 = sand.u32 %s202, 1
        %s418 = smul.addr %s417, 64
        %s419 = scalar_lea.vmem [#allocation13], %s418
        %s420 = smul.u32 8, %s30
        %s421 = smul.u32 16, %s32
        %s422 = smul.u32 8, %s30
        %s423 = smul.u32 8, %s30
        %p425 = scmp.eq.s32.totalorder %s31, 0
        %p426 = scmp.eq.s32.totalorder %s32, 0
        %p427 = pnand %p425, %p426
        %p428 = pneg %p427
        // Predicated region
        $region69: #{graphsage_forward.3} parent=43 // pred_check
          _
        $region70: #{graphsage_forward.3} parent=43 // pred_check_branch
          %430 = sbr.rel (%p427) target = $region72
        $region71: #{graphsage_forward.3} parent=43 // pred_region
          %v431 = vld [vmem:[%s373] sm:$0xf]
          %v432 = vld [vmem:[%s373 + $0x4] sm:$0xf]
          %v433 = vld [vmem:[%s373 + $0x8] sm:$0xf]
          %v434 = vld [vmem:[%s373 + $0xc] sm:$0xf]
          %v435 = vld [vmem:[%s373 + $0x10] sm:$0xf]
          %v436 = vld [vmem:[%s373 + $0x14] sm:$0xf]
          %v437 = vld [vmem:[%s373 + $0x18] sm:$0xf]
          %v438 = vld [vmem:[%s373 + $0x1c] sm:$0xf]
          %v439 = vld [vmem:[#allocation10] sm:$0xf]
          %v440 = vld [vmem:[#allocation10 + $0x4] sm:$0xf]
          %v441 = vld [vmem:[#allocation10 + $0x8] sm:$0xf]
          %v442 = vld [vmem:[#allocation10 + $0xc] sm:$0xf]
          %v443 = vld [vmem:[#allocation10 + $0x10] sm:$0xf]
          %v444 = vld [vmem:[#allocation10 + $0x14] sm:$0xf]
          %v445 = vld [vmem:[#allocation10 + $0x18] sm:$0xf]
          %v446 = vld [vmem:[#allocation10 + $0x1c] sm:$0xf]
          %v447 = vld [vmem:[#allocation10 + $0x20] sm:$0xf]
          %v448 = vld [vmem:[#allocation10 + $0x24] sm:$0xf]
          %v449 = vld [vmem:[#allocation10 + $0x28] sm:$0xf]
          %v450 = vld [vmem:[#allocation10 + $0x2c] sm:$0xf]
          %v451 = vld [vmem:[#allocation10 + $0x30] sm:$0xf]
          %v452 = vld [vmem:[#allocation10 + $0x34] sm:$0xf]
          %v453 = vld [vmem:[#allocation10 + $0x38] sm:$0xf]
          %v454 = vld [vmem:[#allocation10 + $0x3c] sm:$0xf]
          %v455 = vld [vmem:[#allocation11] sm:$0x1]
          %v457 = vlaneseq
          %v458 = vshrl.u32 %v457, 7
          %v459 = vsub.s32 0, %v458
          %v460 = vrot.slane %v455, %v459
          %v470 = vunpack.c.l.b16 %v431
          %v471 = vunpack.c.l.b16 %v432
          %v472 = vunpack.c.l.b16 %v433
          %v473 = vunpack.c.l.b16 %v434
          %v474 = vunpack.c.l.b16 %v435
          %v475 = vunpack.c.l.b16 %v436
          %v476 = vunpack.c.l.b16 %v437
          %v477 = vunpack.c.l.b16 %v438
          %v478 = vpack.c.b16 %v471, %v470
          %v479 = vpack.c.b16 %v473, %v472
          %v480 = vpack.c.b16 %v475, %v474
          %v481 = vpack.c.b16 %v477, %v476
          %v502 = vunpack.c.l.b16 %v439
          %v503 = vunpack.c.l.b16 %v440
          %v504 = vunpack.c.l.b16 %v441
          %v505 = vunpack.c.l.b16 %v442
          %v506 = vunpack.c.l.b16 %v443
          %v507 = vunpack.c.l.b16 %v444
          %v508 = vunpack.c.l.b16 %v445
          %v509 = vunpack.c.l.b16 %v446
          %v510 = vunpack.c.l.b16 %v447
          %v511 = vunpack.c.l.b16 %v448
          %v512 = vunpack.c.l.b16 %v449
          %v513 = vunpack.c.l.b16 %v450
          %v514 = vunpack.c.l.b16 %v451
          %v515 = vunpack.c.l.b16 %v452
          %v516 = vunpack.c.l.b16 %v453
          %v517 = vunpack.c.l.b16 %v454
          %v518 = vpack.c.b16 %v503, %v502
          %v519 = vpack.c.b16 %v505, %v504
          %v520 = vpack.c.b16 %v507, %v506
          %v521 = vpack.c.b16 %v509, %v508
          %v522 = vpack.c.b16 %v511, %v510
          %v523 = vpack.c.b16 %v513, %v512
          %v524 = vpack.c.b16 %v515, %v514
          %v525 = vpack.c.b16 %v517, %v516
          %534 = vmatprep.subr.bf16.mxu0 0
          %535 = vmatpush1.bf16.msra.mxu0 %v518
          %536 = vmatprep.subr.bf16.mxu0 0
          %537 = vmatpush1.bf16.msra.mxu0 %v519
          %538 = vmatprep.subr.bf16.mxu0 0
          %539 = vmatpush1.bf16.msra.mxu0 %v520
          %540 = vmatprep.subr.bf16.mxu0 0
          %541 = vmatpush1.bf16.msra.mxu0 %v521
          %542 = vmatprep.subr.bf16.mxu0 0
          %543 = vmatpush1.bf16.msra.mxu0 %v522
          %544 = vmatprep.subr.bf16.mxu0 0
          %545 = vmatpush1.bf16.msra.mxu0 %v523
          %546 = vmatprep.subr.bf16.mxu0 0
          %547 = vmatpush1.bf16.msra.mxu0 %v524
          %548 = vmatprep.subr.bf16.mxu0 0
          %549 = vmatpush1.bf16.msra.mxu0 %v525
          %550 = vmatprep.subr.bf16.mxu0 0
          %551 = vmatpush1.bf16.msra.mxu0 0
          %552 = vmatprep.subr.bf16.mxu0 0
          %553 = vmatpush1.bf16.msra.mxu0 0
          %554 = vmatprep.subr.bf16.mxu0 0
          %555 = vmatpush1.bf16.msra.mxu0 0
          %556 = vmatprep.subr.bf16.mxu0 0
          %557 = vmatpush1.bf16.msra.mxu0 0
          %558 = vmatprep.subr.bf16.mxu0 0
          %559 = vmatpush1.bf16.msra.mxu0 0
          %560 = vmatprep.subr.bf16.mxu0 0
          %561 = vmatpush1.bf16.msra.mxu0 0
          %562 = vmatprep.subr.bf16.mxu0 0
          %563 = vmatpush1.bf16.msra.mxu0 0
          %564 = vmatprep.subr.bf16.mxu0 0
          %565 = vmatpush1.bf16.msra.mxu0 0
          %566 = vmatprep.mubr.bf16.mxu0 0
          %567 = vmatmul.mubr.bf16.gmra.mrb[0].mxu0 %v478
          %v568 = vpop.f32.mrb[0].mxu0
          %v569 = vadd.f32 %v460, %v568
          %v570 = vpop.f32.mrb[0].mxu0
          %v571 = vpop.f32.mrb[0].mxu0
          %v572 = vadd.f32 %v460, %v571
          %v573 = vpop.f32.mrb[0].mxu0
          %574 = vmatprep.mubr.bf16.mxu0 0
          %575 = vmatmul.mubr.bf16.gmra.mrb[0].mxu0 %v479
          %v576 = vpop.f32.mrb[0].mxu0
          %v577 = vadd.f32 %v460, %v576
          %v578 = vpop.f32.mrb[0].mxu0
          %v579 = vpop.f32.mrb[0].mxu0
          %v580 = vadd.f32 %v460, %v579
          %v581 = vpop.f32.mrb[0].mxu0
          %582 = vmatprep.mubr.bf16.mxu0 0
          %583 = vmatmul.mubr.bf16.gmra.mrb[0].mxu0 %v480
          %v584 = vpop.f32.mrb[0].mxu0
          %v585 = vadd.f32 %v460, %v584
          %v586 = vpop.f32.mrb[0].mxu0
          %v587 = vpop.f32.mrb[0].mxu0
          %v588 = vadd.f32 %v460, %v587
          %v589 = vpop.f32.mrb[0].mxu0
          %590 = vmatprep.mubr.bf16.mxu0 0
          %591 = vmatmul.mubr.bf16.gmra.mrb[0].mxu0 %v481
          %v592 = vpop.f32.mrb[0].mxu0
          %v593 = vadd.f32 %v460, %v592
          %v594 = vpop.f32.mrb[0].mxu0
          %v595 = vpop.f32.mrb[0].mxu0
          %v596 = vadd.f32 %v460, %v595
          %v597 = vpop.f32.mrb[0].mxu0
          %598 = vdwg.mxu0
          %599 = vst [vmem:[%s419] sm:$0xff] %v569
          %600 = vst [vmem:[%s419 + $0x8] sm:$0xff] %v572
          %601 = vst [vmem:[%s419 + $0x10] sm:$0xff] %v577
          %602 = vst [vmem:[%s419 + $0x18] sm:$0xff] %v580
          %603 = vst [vmem:[%s419 + $0x20] sm:$0xff] %v585
          %604 = vst [vmem:[%s419 + $0x28] sm:$0xff] %v588
          %605 = vst [vmem:[%s419 + $0x30] sm:$0xff] %v593
          %606 = vst [vmem:[%s419 + $0x38] sm:$0xff] %v596
        $region72: #{graphsage_forward.3} parent=43 // pred_fallthru
          _
        // Predicated region
        $region73: #{graphsage_forward.3} parent=43 // pred_check
          %p607 = pneg %p426
        $region74: #{graphsage_forward.3} parent=43 // pred_check_branch
          %609 = sbr.rel (%p607) target = $region76
        $region75: #{graphsage_forward.3} parent=43 // pred_region
          %610 = vst [vmem:[#allocation2] sm:$0xff] 0.0
          %611 = vst [vmem:[#allocation2 + $0x8] sm:$0xff] 0.0
          %612 = vst [vmem:[#allocation2 + $0x10] sm:$0xff] 0.0
          %613 = vst [vmem:[#allocation2 + $0x18] sm:$0xff] 0.0
          %614 = vst [vmem:[#allocation2 + $0x20] sm:$0xff] 0.0
          %615 = vst [vmem:[#allocation2 + $0x28] sm:$0xff] 0.0
          %616 = vst [vmem:[#allocation2 + $0x30] sm:$0xff] 0.0
          %617 = vst [vmem:[#allocation2 + $0x38] sm:$0xff] 0.0
        $region76: #{graphsage_forward.3} parent=43 // pred_fallthru
          _
        %v618 = vld [vmem:[#allocation2] sm:$0xff]
        %v619 = vld [vmem:[#allocation2 + $0x8] sm:$0xff]
        %v620 = vld [vmem:[#allocation2 + $0x10] sm:$0xff]
        %v621 = vld [vmem:[#allocation2 + $0x18] sm:$0xff]
        %v622 = vld [vmem:[#allocation2 + $0x20] sm:$0xff]
        %v623 = vld [vmem:[#allocation2 + $0x28] sm:$0xff]
        %v624 = vld [vmem:[#allocation2 + $0x30] sm:$0xff]
        %v625 = vld [vmem:[#allocation2 + $0x38] sm:$0xff]
        %v626 = vld [vmem:[%s351] sm:$0xf]
        %v627 = vld [vmem:[%s351 + $0x4] sm:$0xf]
        %v628 = vld [vmem:[%s351 + $0x8] sm:$0xf]
        %v629 = vld [vmem:[%s351 + $0xc] sm:$0xf]
        %v630 = vld [vmem:[%s351 + $0x10] sm:$0xf]
        %v631 = vld [vmem:[%s351 + $0x14] sm:$0xf]
        %v632 = vld [vmem:[%s351 + $0x18] sm:$0xf]
        %v633 = vld [vmem:[%s351 + $0x1c] sm:$0xf]
        %v634 = vld [vmem:[#allocation6] sm:$0xf]
        %v635 = vld [vmem:[#allocation6 + $0x4] sm:$0xf]
        %v636 = vld [vmem:[#allocation6 + $0x8] sm:$0xf]
        %v637 = vld [vmem:[#allocation6 + $0xc] sm:$0xf]
        %v638 = vld [vmem:[#allocation6 + $0x10] sm:$0xf]
        %v639 = vld [vmem:[#allocation6 + $0x14] sm:$0xf]
        %v640 = vld [vmem:[#allocation6 + $0x18] sm:$0xf]
        %v641 = vld [vmem:[#allocation6 + $0x1c] sm:$0xf]
        %v642 = vld [vmem:[#allocation6 + $0x20] sm:$0xf]
        %v643 = vld [vmem:[#allocation6 + $0x24] sm:$0xf]
        %v644 = vld [vmem:[#allocation6 + $0x28] sm:$0xf]
        %v645 = vld [vmem:[#allocation6 + $0x2c] sm:$0xf]
        %v646 = vld [vmem:[#allocation6 + $0x30] sm:$0xf]
        %v647 = vld [vmem:[#allocation6 + $0x34] sm:$0xf]
        %v648 = vld [vmem:[#allocation6 + $0x38] sm:$0xf]
        %v649 = vld [vmem:[#allocation6 + $0x3c] sm:$0xf]
        %v658 = vunpack.c.l.b16 %v626
        %v659 = vunpack.c.l.b16 %v627
        %v660 = vunpack.c.l.b16 %v628
        %v661 = vunpack.c.l.b16 %v629
        %v662 = vunpack.c.l.b16 %v630
        %v663 = vunpack.c.l.b16 %v631
        %v664 = vunpack.c.l.b16 %v632
        %v665 = vunpack.c.l.b16 %v633
        %v666 = vpack.c.b16 %v659, %v658
        %v667 = vpack.c.b16 %v661, %v660
        %v668 = vpack.c.b16 %v663, %v662
        %v669 = vpack.c.b16 %v665, %v664
        %v690 = vunpack.c.l.b16 %v634
        %v691 = vunpack.c.l.b16 %v635
        %v692 = vunpack.c.l.b16 %v636
        %v693 = vunpack.c.l.b16 %v637
        %v694 = vunpack.c.l.b16 %v638
        %v695 = vunpack.c.l.b16 %v639
        %v696 = vunpack.c.l.b16 %v640
        %v697 = vunpack.c.l.b16 %v641
        %v698 = vunpack.c.l.b16 %v642
        %v699 = vunpack.c.l.b16 %v643
        %v700 = vunpack.c.l.b16 %v644
        %v701 = vunpack.c.l.b16 %v645
        %v702 = vunpack.c.l.b16 %v646
        %v703 = vunpack.c.l.b16 %v647
        %v704 = vunpack.c.l.b16 %v648
        %v705 = vunpack.c.l.b16 %v649
        %v706 = vpack.c.b16 %v691, %v690
        %v707 = vpack.c.b16 %v693, %v692
        %v708 = vpack.c.b16 %v695, %v694
        %v709 = vpack.c.b16 %v697, %v696
        %v710 = vpack.c.b16 %v699, %v698
        %v711 = vpack.c.b16 %v701, %v700
        %v712 = vpack.c.b16 %v703, %v702
        %v713 = vpack.c.b16 %v705, %v704
        %722 = vmatprep.subr.bf16.mxu0 0
        %723 = vmatpush1.bf16.msra.mxu0 %v706
        %724 = vmatprep.subr.bf16.mxu0 0
        %725 = vmatpush1.bf16.msra.mxu0 %v707
        %726 = vmatprep.subr.bf16.mxu0 0
        %727 = vmatpush1.bf16.msra.mxu0 %v708
        %728 = vmatprep.subr.bf16.mxu0 0
        %729 = vmatpush1.bf16.msra.mxu0 %v709
        %730 = vmatprep.subr.bf16.mxu0 0
        %731 = vmatpush1.bf16.msra.mxu0 %v710
        %732 = vmatprep.subr.bf16.mxu0 0
        %733 = vmatpush1.bf16.msra.mxu0 %v711
        %734 = vmatprep.subr.bf16.mxu0 0
        %735 = vmatpush1.bf16.msra.mxu0 %v712
        %736 = vmatprep.subr.bf16.mxu0 0
        %737 = vmatpush1.bf16.msra.mxu0 %v713
        %738 = vmatprep.subr.bf16.mxu0 0
        %739 = vmatpush1.bf16.msra.mxu0 0
        %740 = vmatprep.subr.bf16.mxu0 0
        %741 = vmatpush1.bf16.msra.mxu0 0
        %742 = vmatprep.subr.bf16.mxu0 0
        %743 = vmatpush1.bf16.msra.mxu0 0
        %744 = vmatprep.subr.bf16.mxu0 0
        %745 = vmatpush1.bf16.msra.mxu0 0
        %746 = vmatprep.subr.bf16.mxu0 0
        %747 = vmatpush1.bf16.msra.mxu0 0
        %748 = vmatprep.subr.bf16.mxu0 0
        %749 = vmatpush1.bf16.msra.mxu0 0
        %750 = vmatprep.subr.bf16.mxu0 0
        %751 = vmatpush1.bf16.msra.mxu0 0
        %752 = vmatprep.subr.bf16.mxu0 0
        %753 = vmatpush1.bf16.msra.mxu0 0
        %754 = vmatprep.mubr.bf16.mxu0 0
        %755 = vmatmul.mubr.bf16.gmra.mrb[0].mxu0 %v666
        %v756 = vpop.f32.mrb[0].mxu0
        %v757 = vadd.f32 0.0, %v756
        %v758 = vpop.f32.mrb[0].mxu0
        %v759 = vpop.f32.mrb[0].mxu0
        %v760 = vadd.f32 0.0, %v759
        %v761 = vpop.f32.mrb[0].mxu0
        %762 = vmatprep.mubr.bf16.mxu0 0
        %763 = vmatmul.mubr.bf16.gmra.mrb[0].mxu0 %v667
        %v764 = vpop.f32.mrb[0].mxu0
        %v765 = vadd.f32 0.0, %v764
        %v766 = vpop.f32.mrb[0].mxu0
        %v767 = vpop.f32.mrb[0].mxu0
        %v768 = vadd.f32 0.0, %v767
        %v769 = vpop.f32.mrb[0].mxu0
        %770 = vmatprep.mubr.bf16.mxu0 0
        %771 = vmatmul.mubr.bf16.gmra.mrb[0].mxu0 %v668
        %v772 = vpop.f32.mrb[0].mxu0
        %v773 = vadd.f32 0.0, %v772
        %v774 = vpop.f32.mrb[0].mxu0
        %v775 = vpop.f32.mrb[0].mxu0
        %v776 = vadd.f32 0.0, %v775
        %v777 = vpop.f32.mrb[0].mxu0
        %778 = vmatprep.mubr.bf16.mxu0 0
        %779 = vmatmul.mubr.bf16.gmra.mrb[0].mxu0 %v669
        %v780 = vpop.f32.mrb[0].mxu0
        %v781 = vadd.f32 0.0, %v780
        %v782 = vpop.f32.mrb[0].mxu0
        %v783 = vpop.f32.mrb[0].mxu0
        %v784 = vadd.f32 0.0, %v783
        %v785 = vpop.f32.mrb[0].mxu0
        %786 = vdwg.mxu0
        %v787 = vadd.f32 %v618, %v757
        %v788 = vadd.f32 %v619, %v760
        %v789 = vadd.f32 %v620, %v765
        %v790 = vadd.f32 %v621, %v768
        %v791 = vadd.f32 %v622, %v773
        %v792 = vadd.f32 %v623, %v776
        %v793 = vadd.f32 %v624, %v781
        %v794 = vadd.f32 %v625, %v784
        %795 = vst [vmem:[#allocation2] sm:$0xff] %v787
        %796 = vst [vmem:[#allocation2 + $0x8] sm:$0xff] %v788
        %797 = vst [vmem:[#allocation2 + $0x10] sm:$0xff] %v789
        %798 = vst [vmem:[#allocation2 + $0x18] sm:$0xff] %v790
        %799 = vst [vmem:[#allocation2 + $0x20] sm:$0xff] %v791
        %800 = vst [vmem:[#allocation2 + $0x28] sm:$0xff] %v792
        %801 = vst [vmem:[#allocation2 + $0x30] sm:$0xff] %v793
        %802 = vst [vmem:[#allocation2 + $0x38] sm:$0xff] %v794
        // Predicated region
        $region77: #{graphsage_forward.3} parent=43 // pred_check
          %p803 = pneg %p426
        $region78: #{graphsage_forward.3} parent=43 // pred_check_branch
          %805 = sbr.rel (%p803) target = $region80
        $region79: #{graphsage_forward.3} parent=43 // pred_region
          %v806 = vld [vmem:[%s419] sm:$0xff]
          %v807 = vld [vmem:[%s419 + $0x8] sm:$0xff]
          %v808 = vld [vmem:[%s419 + $0x10] sm:$0xff]
          %v809 = vld [vmem:[%s419 + $0x18] sm:$0xff]
          %v810 = vld [vmem:[%s419 + $0x20] sm:$0xff]
          %v811 = vld [vmem:[%s419 + $0x28] sm:$0xff]
          %v812 = vld [vmem:[%s419 + $0x30] sm:$0xff]
          %v813 = vld [vmem:[%s419 + $0x38] sm:$0xff]
          %v814 = vld [vmem:[#allocation2] sm:$0xff]
          %v815 = vld [vmem:[#allocation2 + $0x8] sm:$0xff]
          %v816 = vld [vmem:[#allocation2 + $0x10] sm:$0xff]
          %v817 = vld [vmem:[#allocation2 + $0x18] sm:$0xff]
          %v818 = vld [vmem:[#allocation2 + $0x20] sm:$0xff]
          %v819 = vld [vmem:[#allocation2 + $0x28] sm:$0xff]
          %v820 = vld [vmem:[#allocation2 + $0x30] sm:$0xff]
          %v821 = vld [vmem:[#allocation2 + $0x38] sm:$0xff]
          %v822 = vld [vmem:[%s364] sm:$0xf]
          %v823 = vld [vmem:[%s364 + $0x4] sm:$0xf]
          %v824 = vld [vmem:[%s364 + $0x8] sm:$0xf]
          %v825 = vld [vmem:[%s364 + $0xc] sm:$0xf]
          %v826 = vld [vmem:[%s364 + $0x10] sm:$0xf]
          %v827 = vld [vmem:[%s364 + $0x14] sm:$0xf]
          %v828 = vld [vmem:[%s364 + $0x18] sm:$0xf]
          %v829 = vld [vmem:[%s364 + $0x1c] sm:$0xf]
          %v830 = vld [vmem:[%s364 + $0x20] sm:$0xf]
          %v831 = vld [vmem:[%s364 + $0x24] sm:$0xf]
          %v832 = vld [vmem:[%s364 + $0x28] sm:$0xf]
          %v833 = vld [vmem:[%s364 + $0x2c] sm:$0xf]
          %v834 = vld [vmem:[%s364 + $0x30] sm:$0xf]
          %v835 = vld [vmem:[%s364 + $0x34] sm:$0xf]
          %v836 = vld [vmem:[%s364 + $0x38] sm:$0xf]
          %v837 = vld [vmem:[%s364 + $0x3c] sm:$0xf]
          %v854 = vunpack.c.l.b16 %v822
          %v855 = vunpack.c.l.b16 %v823
          %v856 = vunpack.c.l.b16 %v824
          %v857 = vunpack.c.l.b16 %v825
          %v858 = vunpack.c.l.b16 %v826
          %v859 = vunpack.c.l.b16 %v827
          %v860 = vunpack.c.l.b16 %v828
          %v861 = vunpack.c.l.b16 %v829
          %v862 = vunpack.c.l.b16 %v830
          %v863 = vunpack.c.l.b16 %v831
          %v864 = vunpack.c.l.b16 %v832
          %v865 = vunpack.c.l.b16 %v833
          %v866 = vunpack.c.l.b16 %v834
          %v867 = vunpack.c.l.b16 %v835
          %v868 = vunpack.c.l.b16 %v836
          %v869 = vunpack.c.l.b16 %v837
          %v870 = vpack.c.b16 %v855, %v854
          %v871 = vpack.c.b16 %v857, %v856
          %v872 = vpack.c.b16 %v859, %v858
          %v873 = vpack.c.b16 %v861, %v860
          %v874 = vpack.c.b16 %v863, %v862
          %v875 = vpack.c.b16 %v865, %v864
          %v876 = vpack.c.b16 %v867, %v866
          %v877 = vpack.c.b16 %v869, %v868
          %886 = vmatprep.subr.bf16.mxu0 0
          %887 = vmatpush1.bf16.msra.mxu0 %v870
          %888 = vmatprep.subr.bf16.mxu0 0
          %889 = vmatpush1.bf16.msra.mxu0 %v871
          %890 = vmatprep.subr.bf16.mxu0 0
          %891 = vmatpush1.bf16.msra.mxu0 %v872
          %892 = vmatprep.subr.bf16.mxu0 0
          %893 = vmatpush1.bf16.msra.mxu0 %v873
          %894 = vmatprep.subr.bf16.mxu0 0
          %895 = vmatpush1.bf16.msra.mxu0 %v874
          %896 = vmatprep.subr.bf16.mxu0 0
          %897 = vmatpush1.bf16.msra.mxu0 %v875
          %898 = vmatprep.subr.bf16.mxu0 0
          %899 = vmatpush1.bf16.msra.mxu0 %v876
          %900 = vmatprep.subr.bf16.mxu0 0
          %901 = vmatpush1.bf16.msra.mxu0 %v877
          %902 = vmatprep.subr.bf16.mxu0 0
          %903 = vmatpush1.bf16.msra.mxu0 0
          %904 = vmatprep.subr.bf16.mxu0 0
          %905 = vmatpush1.bf16.msra.mxu0 0
          %906 = vmatprep.subr.bf16.mxu0 0
          %907 = vmatpush1.bf16.msra.mxu0 0
          %908 = vmatprep.subr.bf16.mxu0 0
          %909 = vmatpush1.bf16.msra.mxu0 0
          %910 = vmatprep.subr.bf16.mxu0 0
          %911 = vmatpush1.bf16.msra.mxu0 0
          %912 = vmatprep.subr.bf16.mxu0 0
          %913 = vmatpush1.bf16.msra.mxu0 0
          %914 = vmatprep.subr.bf16.mxu0 0
          %915 = vmatpush1.bf16.msra.mxu0 0
          %916 = vmatprep.subr.bf16.mxu0 0
          %917 = vmatpush1.bf16.msra.mxu0 0
          %918 = vmatprep.mubr.f32.mxu0 0.0
          %919 = vmatmul.mubr.f32.gmra.mrb[0].mxu0 %v814
          %v920 = vpop.f32.mrb[0].mxu0
          %v921 = vadd.f32 0.0, %v920
          %v922 = vpop.f32.mrb[0].mxu0
          %923 = vmatprep.mubr.f32.mxu0 0.0
          %924 = vmatmul.mubr.f32.gmra.mrb[0].mxu0 %v815
          %v925 = vpop.f32.mrb[0].mxu0
          %v926 = vadd.f32 0.0, %v925
          %v927 = vpop.f32.mrb[0].mxu0
          %928 = vmatprep.mubr.f32.mxu0 0.0
          %929 = vmatmul.mubr.f32.gmra.mrb[0].mxu0 %v816
          %v930 = vpop.f32.mrb[0].mxu0
          %v931 = vadd.f32 0.0, %v930
          %v932 = vpop.f32.mrb[0].mxu0
          %933 = vmatprep.mubr.f32.mxu0 0.0
          %934 = vmatmul.mubr.f32.gmra.mrb[0].mxu0 %v817
          %v935 = vpop.f32.mrb[0].mxu0
          %v936 = vadd.f32 0.0, %v935
          %v937 = vpop.f32.mrb[0].mxu0
          %938 = vmatprep.mubr.f32.mxu0 0.0
          %939 = vmatmul.mubr.f32.gmra.mrb[0].mxu0 %v818
          %v940 = vpop.f32.mrb[0].mxu0
          %v941 = vadd.f32 0.0, %v940
          %v942 = vpop.f32.mrb[0].mxu0
          %943 = vmatprep.mubr.f32.mxu0 0.0
          %944 = vmatmul.mubr.f32.gmra.mrb[0].mxu0 %v819
          %v945 = vpop.f32.mrb[0].mxu0
          %v946 = vadd.f32 0.0, %v945
          %v947 = vpop.f32.mrb[0].mxu0
          %948 = vmatprep.mubr.f32.mxu0 0.0
          %949 = vmatmul.mubr.f32.gmra.mrb[0].mxu0 %v820
          %v950 = vpop.f32.mrb[0].mxu0
          %v951 = vadd.f32 0.0, %v950
          %v952 = vpop.f32.mrb[0].mxu0
          %953 = vmatprep.mubr.f32.mxu0 0.0
          %954 = vmatmul.mubr.f32.gmra.mrb[0].mxu0 %v821
          %v955 = vpop.f32.mrb[0].mxu0
          %v956 = vadd.f32 0.0, %v955
          %v957 = vpop.f32.mrb[0].mxu0
          %958 = vdwg.mxu0
          %v959 = vadd.f32 %v806, %v921
          %v960 = vadd.f32 %v807, %v926
          %v961 = vadd.f32 %v808, %v931
          %v962 = vadd.f32 %v809, %v936
          %v963 = vadd.f32 %v810, %v941
          %v964 = vadd.f32 %v811, %v946
          %v965 = vadd.f32 %v812, %v951
          %v966 = vadd.f32 %v813, %v956
          %967 = vst [vmem:[%s419] sm:$0xff] %v959
          %968 = vst [vmem:[%s419 + $0x8] sm:$0xff] %v960
          %969 = vst [vmem:[%s419 + $0x10] sm:$0xff] %v961
          %970 = vst [vmem:[%s419 + $0x18] sm:$0xff] %v962
          %971 = vst [vmem:[%s419 + $0x20] sm:$0xff] %v963
          %972 = vst [vmem:[%s419 + $0x28] sm:$0xff] %v964
          %973 = vst [vmem:[%s419 + $0x30] sm:$0xff] %v965
          %974 = vst [vmem:[%s419 + $0x38] sm:$0xff] %v966
        $region80: #{graphsage_forward.3} parent=43 // pred_fallthru
          _
        %p975 = scmp.eq.s32.totalorder %s31, 1
        %p976 = pnand %p975, %p426
        %p977 = pneg %p976
        // Predicated region
        $region81: #{graphsage_forward.3} parent=43 // pred_check
          _
        $region82: #{graphsage_forward.3} parent=43 // pred_check_branch
          %979 = sbr.rel (%p976) target = $region84
        $region83: #{graphsage_forward.3} parent=43 // pred_region
          %v980 = vld [vmem:[%s419] sm:$0xff]
          %v981 = vld [vmem:[%s419 + $0x8] sm:$0xff]
          %v982 = vld [vmem:[%s419 + $0x10] sm:$0xff]
          %v983 = vld [vmem:[%s419 + $0x18] sm:$0xff]
          %v984 = vld [vmem:[%s419 + $0x20] sm:$0xff]
          %v985 = vld [vmem:[%s419 + $0x28] sm:$0xff]
          %v986 = vld [vmem:[%s419 + $0x30] sm:$0xff]
          %v987 = vld [vmem:[%s419 + $0x38] sm:$0xff]
          %v988 = vmax.f32 %v980, 0.0
          %v989 = vmax.f32 %v981, 0.0
          %v990 = vmax.f32 %v982, 0.0
          %v991 = vmax.f32 %v983, 0.0
          %v992 = vmax.f32 %v984, 0.0
          %v993 = vmax.f32 %v985, 0.0
          %v994 = vmax.f32 %v986, 0.0
          %v995 = vmax.f32 %v987, 0.0
          %996 = vst [vmem:[%s419] sm:$0xff] %v988
          %997 = vst [vmem:[%s419 + $0x8] sm:$0xff] %v989
          %998 = vst [vmem:[%s419 + $0x10] sm:$0xff] %v990
          %999 = vst [vmem:[%s419 + $0x18] sm:$0xff] %v991
          %1000 = vst [vmem:[%s419 + $0x20] sm:$0xff] %v992
          %1001 = vst [vmem:[%s419 + $0x28] sm:$0xff] %v993
          %1002 = vst [vmem:[%s419 + $0x30] sm:$0xff] %v994
          %1003 = vst [vmem:[%s419 + $0x38] sm:$0xff] %v995
        $region84: #{graphsage_forward.3} parent=43 // pred_fallthru
          _
        %s1004 = sand.u32 %s202, 1
        %s1005 = scalar_lea.sflag [#allocation5], %s1004
        %s1006 = sand.u32 %s202, 1
        %s1007 = smul.addr %s1006, 64
        %s1008 = scalar_lea.vmem [#allocation13], %s1007
        // Predicated region
        $region85: #{graphsage_forward.3} parent=43 // pred_check
          %p1009 = pneg %p212
        $region86: #{graphsage_forward.3} parent=43 // pred_check_branch
          %1011 = sbr.rel (%p1009) target = $region88
        $region87: #{graphsage_forward.3} parent=43 // pred_region
          %s1012 = smul.u32 8, %s30
          %s1014 = ssub.s32 1024, 1024
          %1015 = vsyncadd %s1005, %s1014
          %s1016 = smul.addr %s1012, 128
          %s1017 = scalar_lea.hbm %s6, %s1016
          %s1018 = sshll.u32 %s1008, 4
          %s1019 = int_to_ptr.vmem [resolvable:$true] %s1018
          %1024 = dma.vmem_to_hbm [thread:$0]  %s1019, 1024, %s1017, %s1005, 128, 128, 8
        $region88: #{graphsage_forward.3} parent=43 // pred_fallthru
          _
      $region44: #{graphsage_forward.3} parent=5 // pred_fallthru
        _
      %p1025 = scmp.le.s32.totalorder 2, %s20
      // Predicated region
      $region89: #{graphsage_forward.3} parent=5 // pred_check
        %p1026 = pneg %p1025
      $region90: #{graphsage_forward.3} parent=5 // pred_check_branch
        %1028 = sbr.rel (%p1026) target = $region92
      $region91: #{graphsage_forward.3} parent=5 // pred_region
        %s1029 = ssub.s32 %s20, 2
        // Predicated region
        $region93: #{graphsage_forward.3} parent=91 // pred_check
          %p1030 = pneg %p218
        $region94: #{graphsage_forward.3} parent=91 // pred_check_branch
          %1032 = sbr.rel (%p1030) target = $region96
        $region95: #{graphsage_forward.3} parent=91 // pred_region
          %s1033 = sand.u32 %s203, 1
          %s1034 = scalar_lea.sflag [#allocation5], %s1033
          %s1035 = sand.u32 %s203, 1
          %s1036 = smul.addr %s1035, 64
          %s1037 = scalar_lea.vmem [#allocation13], %s1036
          %1038 = dma.done %s1034, 1024
        $region96: #{graphsage_forward.3} parent=91 // pred_fallthru
          _
      $region92: #{graphsage_forward.3} parent=5 // pred_fallthru
        _
    $region6: #{graphsage_forward.3} parent=1 // loop_footer
      %s24 = sadd.s32 1, %s20
    $region7: #{graphsage_forward.3} parent=1 // loop_footer_branch
      %19 = sbr.rel target = $region3
    $region8: #{graphsage_forward.3} parent=1 // loop_exit
      _
    %1039 = vsyncpa [#allocation4], 1
    %s1040 = scalar_lea.sflag [#allocation4], 1
    %1041 = vsyncpa %s1040, 1
    %1042 = vsyncpa [#allocation7], 1
    %1043 = vsyncpa [#allocation12], 1
    %1044 = vsyncpa [#allocation5], 1
    %s1045 = scalar_lea.sflag [#allocation5], 1
    %1046 = vsyncpa %s1045, 1

// kernel: graphsage_forward.4
$region0: #{graphsage_forward.4}
  #allocation0 [shape = 'u32[]', space=smem, size = 0x4, offset = 0x4, fixed_abs, tag = 'smem constant byte address 0x4 - core index']
  #allocation1 [shape = 'u32[144,128]{1,0:T(1,128)}', space=vmem, size = 0x12000, scoped, tag = 'internal scratch']
  #allocation2 [shape = 'f32[64,128]{1,0:T(8,128)}', space=vmem, size = 0x8000, scoped, tag = 'scratch operand']
  %s0 = inlined_call_operand.hbm [shape: bf16[2,128,128], index: 0, kind: input, shape index: {}]
  %s1 = inlined_call_operand.hbm [shape: f32[128,128], index: 1, kind: input, shape index: {}, may-alias: {1,3}]
  %s2 = inlined_call_operand.hbm [shape: bf16[2,128,128], index: 2, kind: input, shape index: {}]
  %s3 = inlined_call_operand.hbm [shape: f32[128,128], index: 3, kind: input, shape index: {}, may-alias: {1,3}]
  %s4 = inlined_call_operand.hbm [shape: bf16[128,128], index: 4, kind: input, shape index: {}]
  %s5 = inlined_call_operand.hbm [shape: f32[1,128], index: 5, kind: input, shape index: {}]
  %s6 = inlined_call_operand.hbm [shape: f32[128,128], index: 6, kind: output, shape index: {}]
  %s7 = sld [smem:[#allocation0]]
  $region93: #{graphsage_forward.4} parent=0
    _
  %s9 = ssub.s32 1, %s7
  %s10 = scalar_select 0, %s9, %s7
  $region1: #{graphsage_forward.4} parent=0
    #allocation3 [shape = 'u8[32768]{0}', space=vmem, size = 0x8000, scoped, tag = 'input window, operand 0']
    #allocation4 [shape = 's32[2]{0}', space=sflag, size = 0x8, scoped, tag = 'scoped memory for graphsage_forward.4']
    #allocation5 [shape = 's32[2]{0}', space=sflag, size = 0x8, scoped, tag = 'scoped memory for graphsage_forward.4']
    #allocation6 [shape = 'u8[65536]{0}', space=vmem, size = 0x10000, scoped, tag = 'input window, operand 1, single buffered']
    #allocation7 [shape = 's32[1]{0}', space=sflag, size = 0x4, scoped, tag = 'scoped memory for graphsage_forward.4']
    #allocation8 [shape = 'u8[65536]{0}', space=vmem, size = 0x10000, scoped, tag = 'input window, operand 2']
    #allocation9 [shape = 'u8[65536]{0}', space=vmem, size = 0x10000, scoped, tag = 'input window, operand 3']
    #allocation10 [shape = 'u8[32768]{0}', space=vmem, size = 0x8000, scoped, tag = 'input window, operand 4, single buffered']
    #allocation11 [shape = 'u8[512]{0}', space=vmem, size = 0x400, scoped, tag = 'input window, operand 5, single buffered']
    #allocation12 [shape = 's32[1]{0}', space=sflag, size = 0x4, scoped, tag = 'scoped memory for graphsage_forward.4']
    #allocation13 [shape = 'u8[65536]{0}', space=vmem, size = 0x10000, scoped, tag = 'output window, operand 0']
    %11 = vsyncpa [#allocation4], 0
    %s12 = scalar_lea.sflag [#allocation4], 1
    %13 = vsyncpa %s12, 0
    %14 = vsyncpa [#allocation7], 0
    %15 = vsyncpa [#allocation12], 0
    %16 = vsyncpa [#allocation5], 0
    %s17 = scalar_lea.sflag [#allocation5], 1
    %18 = vsyncpa %s17, 0
    loop: start=0, step=1, limit=6
    $region2: #{graphsage_forward.4} parent=1 // loop_pre_header
      _
    $region3: #{graphsage_forward.4} parent=1 // loop_header
      %s20 = sphi 0, %s24
      %p21 = scmp.ge.s32.totalorder %s20, 6
      %s27 = sphi 0, %s46
      %s28 = sphi 0, %s42
      %s29 = sphi 0, %s38
      %s30 = sphi 0, %s27
      %s31 = sphi 0, %s28
      %s32 = sphi 0, %s29
      %s33 = sphi 0, %s30
      %s34 = sphi 0, %s31
      %s35 = sphi 0, %s32
      %s53 = sphi 0, %s55
      %s56 = sphi 0, %s53
      %s57 = sphi 0, %s56
      %s73 = sphi 0, %s57
      %s79 = sphi 0, %s81
      %s82 = sphi 0, %s79
      %s83 = sphi 0, %s82
      %s99 = sphi 0, %s83
      %s105 = sphi 0, %s107
      %s108 = sphi 0, %s105
      %s109 = sphi 0, %s108
      %s125 = sphi 0, %s109
      %s131 = sphi 0, %s133
      %s134 = sphi 0, %s131
      %s135 = sphi 0, %s134
      %s151 = sphi 0, %s135
      %s155 = sphi 0, %s155
      %s157 = sphi 0, %s155
      %s158 = sphi 0, %s157
      %s172 = sphi 0, %s158
      %s176 = sphi 0, %s176
      %s178 = sphi 0, %s176
      %s179 = sphi 0, %s178
      %s193 = sphi 0, %s179
      %s199 = sphi 0, %s201
      %s202 = sphi 0, %s199
      %s203 = sphi 0, %s202
      %s219 = sphi 0, %s203
    $region4: #{graphsage_forward.4} parent=1 // loop_header_branch
      %23 = sbr.rel (%p21) target = $region8
    $region5: #{graphsage_forward.4} parent=1 // loop_body
      %s25 = ssub.s32 %s20, 1
      %s26 = ssub.s32 %s20, 2
      %s36 = sadd.s32 1, %s29
      %p37 = scmp.ge.s32.totalorder %s36, 1
      %s38 = scalar_select %p37, 0, %s36
      %s39 = sadd.s32 1, %s28
      %s40 = scalar_select %p37, %s39, %s28
      %p41 = scmp.ge.s32.totalorder %s40, 2
      %s42 = scalar_select %p41, 0, %s40
      %s43 = sadd.s32 1, %s27
      %s44 = scalar_select %p41, %s43, %s27
      %p45 = scmp.ge.s32.totalorder %s44, 2
      %s46 = scalar_select %p45, 0, %s44
      %s47 = ssub.s32 %s28, %s42
      %s48 = ssub.s32 %s27, %s46
      %s49 = sor.u32 %s47, %s48
      %s50 = ssub.s32 %s29, %s38
      %s51 = sor.u32 %s49, %s50
      %p52 = scmp.eq.s32.totalorder %s51, 0
      %s54 = sadd.s32 %s53, 1
      %s55 = scalar_select %p52, %s53, %s54
      %p58 = pneg %p52
      %p59 = scmp.eq.s32.totalorder %s20, 3
      %p60 = por %p58, %p59
      %p61 = scmp.ne.s32.totalorder %s53, %s56
      %p62 = scmp.eq.s32.totalorder %s20, 0
      %p63 = por %p61, %p62
      %p64 = scmp.ne.s32.totalorder %s53, %s56
      %p65 = scmp.eq.s32.totalorder %s25, 3
      %p66 = por %p64, %p65
      %p67 = scmp.ne.s32.totalorder %s56, %s57
      %p68 = scmp.eq.s32.totalorder %s25, 0
      %p69 = por %p67, %p68
      %p70 = scmp.ne.s32.totalorder %s56, %s57
      %p71 = scmp.eq.s32.totalorder %s26, 3
      %p72 = por %p70, %p71
      %p74 = scmp.ne.s32.totalorder %s57, %s73
      %p75 = scmp.eq.s32.totalorder %s26, 0
      %p76 = por %p74, %p75
      %s77 = ssub.s32 %s29, %s38
      %p78 = scmp.eq.s32.totalorder %s77, 0
      %s80 = sadd.s32 %s79, 1
      %s81 = scalar_select %p78, %s79, %s80
      %p84 = pneg %p78
      %p85 = scmp.eq.s32.totalorder %s20, 3
      %p86 = por %p84, %p85
      %p87 = scmp.ne.s32.totalorder %s79, %s82
      %p88 = scmp.eq.s32.totalorder %s20, 0
      %p89 = por %p87, %p88
      %p90 = scmp.ne.s32.totalorder %s79, %s82
      %p91 = scmp.eq.s32.totalorder %s25, 3
      %p92 = por %p90, %p91
      %p93 = scmp.ne.s32.totalorder %s82, %s83
      %p94 = scmp.eq.s32.totalorder %s25, 0
      %p95 = por %p93, %p94
      %p96 = scmp.ne.s32.totalorder %s82, %s83
      %p97 = scmp.eq.s32.totalorder %s26, 3
      %p98 = por %p96, %p97
      %p100 = scmp.ne.s32.totalorder %s83, %s99
      %p101 = scmp.eq.s32.totalorder %s26, 0
      %p102 = por %p100, %p101
      %s103 = ssub.s32 %s28, %s42
      %p104 = scmp.eq.s32.totalorder %s103, 0
      %s106 = sadd.s32 %s105, 1
      %s107 = scalar_select %p104, %s105, %s106
      %p110 = pneg %p104
      %p111 = scmp.eq.s32.totalorder %s20, 3
      %p112 = por %p110, %p111
      %p113 = scmp.ne.s32.totalorder %s105, %s108
      %p114 = scmp.eq.s32.totalorder %s20, 0
      %p115 = por %p113, %p114
      %p116 = scmp.ne.s32.totalorder %s105, %s108
      %p117 = scmp.eq.s32.totalorder %s25, 3
      %p118 = por %p116, %p117
      %p119 = scmp.ne.s32.totalorder %s108, %s109
      %p120 = scmp.eq.s32.totalorder %s25, 0
      %p121 = por %p119, %p120
      %p122 = scmp.ne.s32.totalorder %s108, %s109
      %p123 = scmp.eq.s32.totalorder %s26, 3
      %p124 = por %p122, %p123
      %p126 = scmp.ne.s32.totalorder %s109, %s125
      %p127 = scmp.eq.s32.totalorder %s26, 0
      %p128 = por %p126, %p127
      %s129 = ssub.s32 %s27, %s46
      %p130 = scmp.eq.s32.totalorder %s129, 0
      %s132 = sadd.s32 %s131, 1
      %s133 = scalar_select %p130, %s131, %s132
      %p136 = pneg %p130
      %p137 = scmp.eq.s32.totalorder %s20, 3
      %p138 = por %p136, %p137
      %p139 = scmp.ne.s32.totalorder %s131, %s134
      %p140 = scmp.eq.s32.totalorder %s20, 0
      %p141 = por %p139, %p140
      %p142 = scmp.ne.s32.totalorder %s131, %s134
      %p143 = scmp.eq.s32.totalorder %s25, 3
      %p144 = por %p142, %p143
      %p145 = scmp.ne.s32.totalorder %s134, %s135
      %p146 = scmp.eq.s32.totalorder %s25, 0
      %p147 = por %p145, %p146
      %p148 = scmp.ne.s32.totalorder %s134, %s135
      %p149 = scmp.eq.s32.totalorder %s26, 3
      %p150 = por %p148, %p149
      %p152 = scmp.ne.s32.totalorder %s135, %s151
      %p153 = scmp.eq.s32.totalorder %s26, 0
      %p154 = por %p152, %p153
      %s156 = sadd.s32 %s155, 1
      %p159 = scmp.eq.s32.totalorder %s20, 3
      %p160 = scmp.ne.s32.totalorder %s155, %s157
      %p161 = scmp.eq.s32.totalorder %s20, 0
      %p162 = por %p160, %p161
      %p163 = scmp.ne.s32.totalorder %s155, %s157
      %p164 = scmp.eq.s32.totalorder %s25, 3
      %p165 = por %p163, %p164
      %p166 = scmp.ne.s32.totalorder %s157, %s158
      %p167 = scmp.eq.s32.totalorder %s25, 0
      %p168 = por %p166, %p167
      %p169 = scmp.ne.s32.totalorder %s157, %s158
      %p170 = scmp.eq.s32.totalorder %s26, 3
      %p171 = por %p169, %p170
      %p173 = scmp.ne.s32.totalorder %s158, %s172
      %p174 = scmp.eq.s32.totalorder %s26, 0
      %p175 = por %p173, %p174
      %s177 = sadd.s32 %s176, 1
      %p180 = scmp.eq.s32.totalorder %s20, 3
      %p181 = scmp.ne.s32.totalorder %s176, %s178
      %p182 = scmp.eq.s32.totalorder %s20, 0
      %p183 = por %p181, %p182
      %p184 = scmp.ne.s32.totalorder %s176, %s178
      %p185 = scmp.eq.s32.totalorder %s25, 3
      %p186 = por %p184, %p185
      %p187 = scmp.ne.s32.totalorder %s178, %s179
      %p188 = scmp.eq.s32.totalorder %s25, 0
      %p189 = por %p187, %p188
      %p190 = scmp.ne.s32.totalorder %s178, %s179
      %p191 = scmp.eq.s32.totalorder %s26, 3
      %p192 = por %p190, %p191
      %p194 = scmp.ne.s32.totalorder %s179, %s193
      %p195 = scmp.eq.s32.totalorder %s26, 0
      %p196 = por %p194, %p195
      %s197 = ssub.s32 %s27, %s46
      %p198 = scmp.eq.s32.totalorder %s197, 0
      %s200 = sadd.s32 %s199, 1
      %s201 = scalar_select %p198, %s199, %s200
      %p204 = pneg %p198
      %p205 = scmp.eq.s32.totalorder %s20, 3
      %p206 = por %p204, %p205
      %p207 = scmp.ne.s32.totalorder %s199, %s202
      %p208 = scmp.eq.s32.totalorder %s20, 0
      %p209 = por %p207, %p208
      %p210 = scmp.ne.s32.totalorder %s199, %s202
      %p211 = scmp.eq.s32.totalorder %s25, 3
      %p212 = por %p210, %p211
      %p213 = scmp.ne.s32.totalorder %s202, %s203
      %p214 = scmp.eq.s32.totalorder %s25, 0
      %p215 = por %p213, %p214
      %p216 = scmp.ne.s32.totalorder %s202, %s203
      %p217 = scmp.eq.s32.totalorder %s26, 3
      %p218 = por %p216, %p217
      %p220 = scmp.ne.s32.totalorder %s203, %s219
      %p221 = scmp.eq.s32.totalorder %s26, 0
      %p222 = por %p220, %p221
      %p223 = scmp.le.s32.totalorder 1, %s20
      %p224 = scmp.lt.s32.totalorder %s20, 5
      %p225 = pnand %p223, %p224
      %p226 = pneg %p225
      // Predicated region
      $region9: #{graphsage_forward.4} parent=5 // pred_check
        _
      $region10: #{graphsage_forward.4} parent=5 // pred_check_branch
        %228 = sbr.rel (%p225) target = $region12
      $region11: #{graphsage_forward.4} parent=5 // pred_region
        %s229 = ssub.s32 %s20, 1
        // Predicated region
        $region13: #{graphsage_forward.4} parent=11 // pred_check
          %p230 = pneg %p95
        $region14: #{graphsage_forward.4} parent=11 // pred_check_branch
          %232 = sbr.rel (%p230) target = $region16
        $region15: #{graphsage_forward.4} parent=11 // pred_region
          %s233 = smul.u32 16, %s32
          %s235 = ssub.s32 2048, 2048
          %236 = vsyncadd [#allocation7], %s235
          %s237 = smul.addr %s233, 128
          %s238 = scalar_lea.hbm %s1, %s237
          %s239 = sshll.u32 [#allocation6], 4
          %s240 = int_to_ptr.vmem [resolvable:$true] %s239
          %245 = dma.hbm_to_vmem [thread:$0]  %s238, 2048, %s240, [#allocation7], 128, 128, 8
        $region16: #{graphsage_forward.4} parent=11 // pred_fallthru
          _
        // Predicated region
        $region17: #{graphsage_forward.4} parent=11 // pred_check
          %p246 = pneg %p168
        $region18: #{graphsage_forward.4} parent=11 // pred_check_branch
          %248 = sbr.rel (%p246) target = $region20
        $region19: #{graphsage_forward.4} parent=11 // pred_region
          %s250 = ssub.s32 1024, 1024
          %251 = vsyncadd [#allocation7], %s250
          %s252 = sshll.u32 [#allocation10], 4
          %s253 = int_to_ptr.vmem [resolvable:$true] %s252
          %258 = dma.hbm_to_vmem [thread:$0]  %s4, 1024, %s253, [#allocation7], 64, 64, 4
        $region20: #{graphsage_forward.4} parent=11 // pred_fallthru
          _
        // Predicated region
        $region21: #{graphsage_forward.4} parent=11 // pred_check
          %p259 = pneg %p189
        $region22: #{graphsage_forward.4} parent=11 // pred_check_branch
          %261 = sbr.rel (%p259) target = $region24
        $region23: #{graphsage_forward.4} parent=11 // pred_region
          %s263 = ssub.s32 16, 16
          %264 = vsyncadd [#allocation12], %s263
          %s266 = sshll.u32 [#allocation11], 4
          %s267 = int_to_ptr.vmem [resolvable:$true] %s266
          %269 = dma.hbm_to_vmem [thread:$0]  %s5, 16, %s267, [#allocation12]
        $region24: #{graphsage_forward.4} parent=11 // pred_fallthru
          _
      $region12: #{graphsage_forward.4} parent=5 // pred_fallthru
        _
      %p270 = scmp.lt.s32.totalorder %s20, 4
      // Predicated region
      $region25: #{graphsage_forward.4} parent=5 // pred_check
        %p271 = pneg %p270
      $region26: #{graphsage_forward.4} parent=5 // pred_check_branch
        %273 = sbr.rel (%p271) target = $region28
      $region27: #{graphsage_forward.4} parent=5 // pred_region
        // Predicated region
        $region29: #{graphsage_forward.4} parent=27 // pred_check
          %p274 = pneg %p63
        $region30: #{graphsage_forward.4} parent=27 // pred_check_branch
          %276 = sbr.rel (%p274) target = $region32
        $region31: #{graphsage_forward.4} parent=27 // pred_region
          %s277 = sand.u32 %s20, 1
          %s278 = scalar_lea.sflag [#allocation4], %s277
          %s279 = sand.u32 %s53, 1
          %s280 = smul.addr %s279, 32
          %s281 = scalar_lea.vmem [#allocation3], %s280
          %s282 = smul.u32 8, %s27
          %s284 = ssub.s32 512, 512
          %285 = vsyncadd %s278, %s284
          %s286 = sadd.s32 %s29, %s282
          %s287 = smul.addr %s28, 16
          %s288 = sadd.s32 %s286, %s287
          %s289 = smul.addr %s288, 64
          %s290 = scalar_lea.hbm %s0, %s289
          %s291 = sshll.u32 %s281, 4
          %s292 = int_to_ptr.vmem [resolvable:$true] %s291
          %297 = dma.hbm_to_vmem [thread:$0]  %s290, 512, %s292, %s278, 64, 64, 4
        $region32: #{graphsage_forward.4} parent=27 // pred_fallthru
          _
        // Predicated region
        $region33: #{graphsage_forward.4} parent=27 // pred_check
          %p298 = pneg %p115
        $region34: #{graphsage_forward.4} parent=27 // pred_check_branch
          %300 = sbr.rel (%p298) target = $region36
        $region35: #{graphsage_forward.4} parent=27 // pred_region
          %s301 = sand.u32 %s20, 1
          %s302 = scalar_lea.sflag [#allocation4], %s301
          %s303 = sand.u32 %s105, 1
          %s304 = smul.addr %s303, 64
          %s305 = scalar_lea.vmem [#allocation8], %s304
          %s307 = ssub.s32 1024, 1024
          %308 = vsyncadd %s302, %s307
          %s309 = smul.addr %s28, 16
          %s310 = smul.addr %s309, 64
          %s311 = scalar_lea.hbm %s2, %s310
          %s312 = sshll.u32 %s305, 4
          %s313 = int_to_ptr.vmem [resolvable:$true] %s312
          %318 = dma.hbm_to_vmem [thread:$0]  %s311, 1024, %s313, %s302, 64, 64, 4
        $region36: #{graphsage_forward.4} parent=27 // pred_fallthru
          _
        // Predicated region
        $region37: #{graphsage_forward.4} parent=27 // pred_check
          %p319 = pneg %p141
        $region38: #{graphsage_forward.4} parent=27 // pred_check_branch
          %321 = sbr.rel (%p319) target = $region40
        $region39: #{graphsage_forward.4} parent=27 // pred_region
          %s322 = sand.u32 %s20, 1
          %s323 = scalar_lea.sflag [#allocation4], %s322
          %s324 = sand.u32 %s131, 1
          %s325 = smul.addr %s324, 64
          %s326 = scalar_lea.vmem [#allocation9], %s325
          %s327 = smul.u32 8, %s27
          %s329 = ssub.s32 1024, 1024
          %330 = vsyncadd %s323, %s329
          %s331 = smul.addr %s327, 128
          %s332 = scalar_lea.hbm %s3, %s331
          %s333 = sshll.u32 %s326, 4
          %s334 = int_to_ptr.vmem [resolvable:$true] %s333
          %339 = dma.hbm_to_vmem [thread:$0]  %s332, 1024, %s334, %s323, 128, 128, 8
        $region40: #{graphsage_forward.4} parent=27 // pred_fallthru
          _
      $region28: #{graphsage_forward.4} parent=5 // pred_fallthru
        _
      %p340 = scmp.le.s32.totalorder 1, %s20
      %p341 = scmp.lt.s32.totalorder %s20, 5
      %p342 = pnand %p340, %p341
      %p343 = pneg %p342
      // Predicated region
      $region41: #{graphsage_forward.4} parent=5 // pred_check
        _
      $region42: #{graphsage_forward.4} parent=5 // pred_check_branch
        %345 = sbr.rel (%p342) target = $region44
      $region43: #{graphsage_forward.4} parent=5 // pred_region
        %s346 = ssub.s32 %s20, 1
        %s347 = sand.u32 %s25, 1
        %s348 = scalar_lea.sflag [#allocation4], %s347
        %s349 = sand.u32 %s56, 1
        %s350 = smul.addr %s349, 32
        %s351 = scalar_lea.vmem [#allocation3], %s350
        // Predicated region
        $region45: #{graphsage_forward.4} parent=43 // pred_check
          %p352 = pneg %p69
        $region46: #{graphsage_forward.4} parent=43 // pred_check_branch
          %354 = sbr.rel (%p352) target = $region48
        $region47: #{graphsage_forward.4} parent=43 // pred_region
          %355 = dma.done %s348, 512
        $region48: #{graphsage_forward.4} parent=43 // pred_fallthru
          _
        // Predicated region
        $region49: #{graphsage_forward.4} parent=43 // pred_check
          %p356 = pneg %p95
        $region50: #{graphsage_forward.4} parent=43 // pred_check_branch
          %358 = sbr.rel (%p356) target = $region52
        $region51: #{graphsage_forward.4} parent=43 // pred_region
          %359 = dma.done [#allocation7], 2048
        $region52: #{graphsage_forward.4} parent=43 // pred_fallthru
          _
        %s360 = sand.u32 %s25, 1
        %s361 = scalar_lea.sflag [#allocation4], %s360
        %s362 = sand.u32 %s108, 1
        %s363 = smul.addr %s362, 64
        %s364 = scalar_lea.vmem [#allocation8], %s363
        // Predicated region
        $region53: #{graphsage_forward.4} parent=43 // pred_check
          %p365 = pneg %p121
        $region54: #{graphsage_forward.4} parent=43 // pred_check_branch
          %367 = sbr.rel (%p365) target = $region56
        $region55: #{graphsage_forward.4} parent=43 // pred_region
          %368 = dma.done %s361, 1024
        $region56: #{graphsage_forward.4} parent=43 // pred_fallthru
          _
        %s369 = sand.u32 %s25, 1
        %s370 = scalar_lea.sflag [#allocation4], %s369
        %s371 = sand.u32 %s134, 1
        %s372 = smul.addr %s371, 64
        %s373 = scalar_lea.vmem [#allocation9], %s372
        // Predicated region
        $region57: #{graphsage_forward.4} parent=43 // pred_check
          %p374 = pneg %p147
        $region58: #{graphsage_forward.4} parent=43 // pred_check_branch
          %376 = sbr.rel (%p374) target = $region60
        $region59: #{graphsage_forward.4} parent=43 // pred_region
          %377 = dma.done %s370, 1024
        $region60: #{graphsage_forward.4} parent=43 // pred_fallthru
          _
        // Predicated region
        $region61: #{graphsage_forward.4} parent=43 // pred_check
          %p378 = pneg %p168
        $region62: #{graphsage_forward.4} parent=43 // pred_check_branch
          %380 = sbr.rel (%p378) target = $region64
        $region63: #{graphsage_forward.4} parent=43 // pred_region
          %381 = dma.done [#allocation7], 1024
        $region64: #{graphsage_forward.4} parent=43 // pred_fallthru
          _
        // Predicated region
        $region65: #{graphsage_forward.4} parent=43 // pred_check
          %p382 = pneg %p189
        $region66: #{graphsage_forward.4} parent=43 // pred_check_branch
          %384 = sbr.rel (%p382) target = $region68
        $region67: #{graphsage_forward.4} parent=43 // pred_region
          %385 = dma.done [#allocation12], 16
        $region68: #{graphsage_forward.4} parent=43 // pred_fallthru
          _
        %s386 = sand.u32 %s25, 1
        %s387 = scalar_lea.sflag [#allocation4], %s386
        %s388 = sand.u32 %s56, 1
        %s389 = smul.addr %s388, 32
        %s390 = scalar_lea.vmem [#allocation3], %s389
        %p391 = pneg %p69
        %p392 = pneg %p66
        %p393 = pneg %p95
        %p394 = pneg %p92
        %s395 = sand.u32 %s25, 1
        %s396 = scalar_lea.sflag [#allocation4], %s395
        %s397 = sand.u32 %s108, 1
        %s398 = smul.addr %s397, 64
        %s399 = scalar_lea.vmem [#allocation8], %s398
        %p400 = pneg %p121
        %p401 = pneg %p118
        %s402 = sand.u32 %s25, 1
        %s403 = scalar_lea.sflag [#allocation4], %s402
        %s404 = sand.u32 %s134, 1
        %s405 = smul.addr %s404, 64
        %s406 = scalar_lea.vmem [#allocation9], %s405
        %p407 = pneg %p147
        %p408 = pneg %p144
        %p409 = pneg %p168
        %p410 = pneg %p165
        %p411 = pneg %p189
        %p412 = pneg %p186
        %p413 = pneg %p215
        %p414 = pneg %p212
        %s415 = sand.u32 %s202, 1
        %s416 = scalar_lea.sflag [#allocation5], %s415
        %s417 = sand.u32 %s202, 1
        %s418 = smul.addr %s417, 64
        %s419 = scalar_lea.vmem [#allocation13], %s418
        %s420 = smul.u32 8, %s30
        %s421 = smul.u32 16, %s32
        %s422 = smul.u32 8, %s30
        %s423 = smul.u32 8, %s30
        %p425 = scmp.eq.s32.totalorder %s31, 0
        %p426 = scmp.eq.s32.totalorder %s32, 0
        %p427 = pnand %p425, %p426
        %p428 = pneg %p427
        // Predicated region
        $region69: #{graphsage_forward.4} parent=43 // pred_check
          _
        $region70: #{graphsage_forward.4} parent=43 // pred_check_branch
          %430 = sbr.rel (%p427) target = $region72
        $region71: #{graphsage_forward.4} parent=43 // pred_region
          %v431 = vld [vmem:[%s373] sm:$0xff]
          %v432 = vld [vmem:[%s373 + $0x8] sm:$0xff]
          %v433 = vld [vmem:[%s373 + $0x10] sm:$0xff]
          %v434 = vld [vmem:[%s373 + $0x18] sm:$0xff]
          %v435 = vld [vmem:[%s373 + $0x20] sm:$0xff]
          %v436 = vld [vmem:[%s373 + $0x28] sm:$0xff]
          %v437 = vld [vmem:[%s373 + $0x30] sm:$0xff]
          %v438 = vld [vmem:[%s373 + $0x38] sm:$0xff]
          %v439 = vld [vmem:[#allocation10] sm:$0xf]
          %v440 = vld [vmem:[#allocation10 + $0x4] sm:$0xf]
          %v441 = vld [vmem:[#allocation10 + $0x8] sm:$0xf]
          %v442 = vld [vmem:[#allocation10 + $0xc] sm:$0xf]
          %v443 = vld [vmem:[#allocation10 + $0x10] sm:$0xf]
          %v444 = vld [vmem:[#allocation10 + $0x14] sm:$0xf]
          %v445 = vld [vmem:[#allocation10 + $0x18] sm:$0xf]
          %v446 = vld [vmem:[#allocation10 + $0x1c] sm:$0xf]
          %v447 = vld [vmem:[#allocation10 + $0x20] sm:$0xf]
          %v448 = vld [vmem:[#allocation10 + $0x24] sm:$0xf]
          %v449 = vld [vmem:[#allocation10 + $0x28] sm:$0xf]
          %v450 = vld [vmem:[#allocation10 + $0x2c] sm:$0xf]
          %v451 = vld [vmem:[#allocation10 + $0x30] sm:$0xf]
          %v452 = vld [vmem:[#allocation10 + $0x34] sm:$0xf]
          %v453 = vld [vmem:[#allocation10 + $0x38] sm:$0xf]
          %v454 = vld [vmem:[#allocation10 + $0x3c] sm:$0xf]
          %v455 = vld [vmem:[#allocation11] sm:$0x1]
          %v457 = vlaneseq
          %v458 = vshrl.u32 %v457, 7
          %v459 = vsub.s32 0, %v458
          %v460 = vrot.slane %v455, %v459
          %v478 = vunpack.c.l.b16 %v439
          %v479 = vunpack.c.l.b16 %v440
          %v480 = vunpack.c.l.b16 %v441
          %v481 = vunpack.c.l.b16 %v442
          %v482 = vunpack.c.l.b16 %v443
          %v483 = vunpack.c.l.b16 %v444
          %v484 = vunpack.c.l.b16 %v445
          %v485 = vunpack.c.l.b16 %v446
          %v486 = vunpack.c.l.b16 %v447
          %v487 = vunpack.c.l.b16 %v448
          %v488 = vunpack.c.l.b16 %v449
          %v489 = vunpack.c.l.b16 %v450
          %v490 = vunpack.c.l.b16 %v451
          %v491 = vunpack.c.l.b16 %v452
          %v492 = vunpack.c.l.b16 %v453
          %v493 = vunpack.c.l.b16 %v454
          %v494 = vpack.c.b16 %v479, %v478
          %v495 = vpack.c.b16 %v481, %v480
          %v496 = vpack.c.b16 %v483, %v482
          %v497 = vpack.c.b16 %v485, %v484
          %v498 = vpack.c.b16 %v487, %v486
          %v499 = vpack.c.b16 %v489, %v488
          %v500 = vpack.c.b16 %v491, %v490
          %v501 = vpack.c.b16 %v493, %v492
          %510 = vmatprep.subr.bf16.mxu0 0
          %511 = vmatpush1.bf16.msra.mxu0 %v494
          %512 = vmatprep.subr.bf16.mxu0 0
          %513 = vmatpush1.bf16.msra.mxu0 %v495
          %514 = vmatprep.subr.bf16.mxu0 0
          %515 = vmatpush1.bf16.msra.mxu0 %v496
          %516 = vmatprep.subr.bf16.mxu0 0
          %517 = vmatpush1.bf16.msra.mxu0 %v497
          %518 = vmatprep.subr.bf16.mxu0 0
          %519 = vmatpush1.bf16.msra.mxu0 %v498
          %520 = vmatprep.subr.bf16.mxu0 0
          %521 = vmatpush1.bf16.msra.mxu0 %v499
          %522 = vmatprep.subr.bf16.mxu0 0
          %523 = vmatpush1.bf16.msra.mxu0 %v500
          %524 = vmatprep.subr.bf16.mxu0 0
          %525 = vmatpush1.bf16.msra.mxu0 %v501
          %526 = vmatprep.subr.bf16.mxu0 0
          %527 = vmatpush1.bf16.msra.mxu0 0
          %528 = vmatprep.subr.bf16.mxu0 0
          %529 = vmatpush1.bf16.msra.mxu0 0
          %530 = vmatprep.subr.bf16.mxu0 0
          %531 = vmatpush1.bf16.msra.mxu0 0
          %532 = vmatprep.subr.bf16.mxu0 0
          %533 = vmatpush1.bf16.msra.mxu0 0
          %534 = vmatprep.subr.bf16.mxu0 0
          %535 = vmatpush1.bf16.msra.mxu0 0
          %536 = vmatprep.subr.bf16.mxu0 0
          %537 = vmatpush1.bf16.msra.mxu0 0
          %538 = vmatprep.subr.bf16.mxu0 0
          %539 = vmatpush1.bf16.msra.mxu0 0
          %540 = vmatprep.subr.bf16.mxu0 0
          %541 = vmatpush1.bf16.msra.mxu0 0
          %542 = vmatprep.mubr.f32.mxu0 0.0
          %543 = vmatmul.mubr.f32.gmra.mrb[0].mxu0 %v431
          %v544 = vpop.f32.mrb[0].mxu0
          %v545 = vadd.f32 %v460, %v544
          %v546 = vpop.f32.mrb[0].mxu0
          %547 = vmatprep.mubr.f32.mxu0 0.0
          %548 = vmatmul.mubr.f32.gmra.mrb[0].mxu0 %v432
          %v549 = vpop.f32.mrb[0].mxu0
          %v550 = vadd.f32 %v460, %v549
          %v551 = vpop.f32.mrb[0].mxu0
          %552 = vmatprep.mubr.f32.mxu0 0.0
          %553 = vmatmul.mubr.f32.gmra.mrb[0].mxu0 %v433
          %v554 = vpop.f32.mrb[0].mxu0
          %v555 = vadd.f32 %v460, %v554
          %v556 = vpop.f32.mrb[0].mxu0
          %557 = vmatprep.mubr.f32.mxu0 0.0
          %558 = vmatmul.mubr.f32.gmra.mrb[0].mxu0 %v434
          %v559 = vpop.f32.mrb[0].mxu0
          %v560 = vadd.f32 %v460, %v559
          %v561 = vpop.f32.mrb[0].mxu0
          %562 = vmatprep.mubr.f32.mxu0 0.0
          %563 = vmatmul.mubr.f32.gmra.mrb[0].mxu0 %v435
          %v564 = vpop.f32.mrb[0].mxu0
          %v565 = vadd.f32 %v460, %v564
          %v566 = vpop.f32.mrb[0].mxu0
          %567 = vmatprep.mubr.f32.mxu0 0.0
          %568 = vmatmul.mubr.f32.gmra.mrb[0].mxu0 %v436
          %v569 = vpop.f32.mrb[0].mxu0
          %v570 = vadd.f32 %v460, %v569
          %v571 = vpop.f32.mrb[0].mxu0
          %572 = vmatprep.mubr.f32.mxu0 0.0
          %573 = vmatmul.mubr.f32.gmra.mrb[0].mxu0 %v437
          %v574 = vpop.f32.mrb[0].mxu0
          %v575 = vadd.f32 %v460, %v574
          %v576 = vpop.f32.mrb[0].mxu0
          %577 = vmatprep.mubr.f32.mxu0 0.0
          %578 = vmatmul.mubr.f32.gmra.mrb[0].mxu0 %v438
          %v579 = vpop.f32.mrb[0].mxu0
          %v580 = vadd.f32 %v460, %v579
          %v581 = vpop.f32.mrb[0].mxu0
          %582 = vdwg.mxu0
          %583 = vst [vmem:[%s419] sm:$0xff] %v545
          %584 = vst [vmem:[%s419 + $0x8] sm:$0xff] %v550
          %585 = vst [vmem:[%s419 + $0x10] sm:$0xff] %v555
          %586 = vst [vmem:[%s419 + $0x18] sm:$0xff] %v560
          %587 = vst [vmem:[%s419 + $0x20] sm:$0xff] %v565
          %588 = vst [vmem:[%s419 + $0x28] sm:$0xff] %v570
          %589 = vst [vmem:[%s419 + $0x30] sm:$0xff] %v575
          %590 = vst [vmem:[%s419 + $0x38] sm:$0xff] %v580
        $region72: #{graphsage_forward.4} parent=43 // pred_fallthru
          _
        // Predicated region
        $region73: #{graphsage_forward.4} parent=43 // pred_check
          %p591 = pneg %p426
        $region74: #{graphsage_forward.4} parent=43 // pred_check_branch
          %593 = sbr.rel (%p591) target = $region76
        $region75: #{graphsage_forward.4} parent=43 // pred_region
          %594 = vst [vmem:[#allocation2] sm:$0xff] 0.0
          %595 = vst [vmem:[#allocation2 + $0x8] sm:$0xff] 0.0
          %596 = vst [vmem:[#allocation2 + $0x10] sm:$0xff] 0.0
          %597 = vst [vmem:[#allocation2 + $0x18] sm:$0xff] 0.0
          %598 = vst [vmem:[#allocation2 + $0x20] sm:$0xff] 0.0
          %599 = vst [vmem:[#allocation2 + $0x28] sm:$0xff] 0.0
          %600 = vst [vmem:[#allocation2 + $0x30] sm:$0xff] 0.0
          %601 = vst [vmem:[#allocation2 + $0x38] sm:$0xff] 0.0
        $region76: #{graphsage_forward.4} parent=43 // pred_fallthru
          _
        %v602 = vld [vmem:[#allocation2] sm:$0xff]
        %v603 = vld [vmem:[#allocation2 + $0x8] sm:$0xff]
        %v604 = vld [vmem:[#allocation2 + $0x10] sm:$0xff]
        %v605 = vld [vmem:[#allocation2 + $0x18] sm:$0xff]
        %v606 = vld [vmem:[#allocation2 + $0x20] sm:$0xff]
        %v607 = vld [vmem:[#allocation2 + $0x28] sm:$0xff]
        %v608 = vld [vmem:[#allocation2 + $0x30] sm:$0xff]
        %v609 = vld [vmem:[#allocation2 + $0x38] sm:$0xff]
        %v610 = vld [vmem:[%s351] sm:$0xf]
        %v611 = vld [vmem:[%s351 + $0x4] sm:$0xf]
        %v612 = vld [vmem:[%s351 + $0x8] sm:$0xf]
        %v613 = vld [vmem:[%s351 + $0xc] sm:$0xf]
        %v614 = vld [vmem:[%s351 + $0x10] sm:$0xf]
        %v615 = vld [vmem:[%s351 + $0x14] sm:$0xf]
        %v616 = vld [vmem:[%s351 + $0x18] sm:$0xf]
        %v617 = vld [vmem:[%s351 + $0x1c] sm:$0xf]
        %v618 = vld [vmem:[#allocation6] sm:$0xff]
        %v619 = vld [vmem:[#allocation6 + $0x8] sm:$0xff]
        %v620 = vld [vmem:[#allocation6 + $0x10] sm:$0xff]
        %v621 = vld [vmem:[#allocation6 + $0x18] sm:$0xff]
        %v622 = vld [vmem:[#allocation6 + $0x20] sm:$0xff]
        %v623 = vld [vmem:[#allocation6 + $0x28] sm:$0xff]
        %v624 = vld [vmem:[#allocation6 + $0x30] sm:$0xff]
        %v625 = vld [vmem:[#allocation6 + $0x38] sm:$0xff]
        %v626 = vld [vmem:[#allocation6 + $0x40] sm:$0xff]
        %v627 = vld [vmem:[#allocation6 + $0x48] sm:$0xff]
        %v628 = vld [vmem:[#allocation6 + $0x50] sm:$0xff]
        %v629 = vld [vmem:[#allocation6 + $0x58] sm:$0xff]
        %v630 = vld [vmem:[#allocation6 + $0x60] sm:$0xff]
        %v631 = vld [vmem:[#allocation6 + $0x68] sm:$0xff]
        %v632 = vld [vmem:[#allocation6 + $0x70] sm:$0xff]
        %v633 = vld [vmem:[#allocation6 + $0x78] sm:$0xff]
        %v642 = vunpack.c.l.b16 %v610
        %v643 = vunpack.c.l.b16 %v611
        %v644 = vunpack.c.l.b16 %v612
        %v645 = vunpack.c.l.b16 %v613
        %v646 = vunpack.c.l.b16 %v614
        %v647 = vunpack.c.l.b16 %v615
        %v648 = vunpack.c.l.b16 %v616
        %v649 = vunpack.c.l.b16 %v617
        %v650 = vpack.c.b16 %v643, %v642
        %v651 = vpack.c.b16 %v645, %v644
        %v652 = vpack.c.b16 %v647, %v646
        %v653 = vpack.c.b16 %v649, %v648
        %658 = vmatprep.subr.mxu0 0.0
        %659 = vmatpush1.msra.mxu0 %v618
        %660 = vmatprep.subr.mxu0 0.0
        %661 = vmatpush1.msra.mxu0 %v619
        %662 = vmatprep.subr.mxu0 0.0
        %663 = vmatpush1.msra.mxu0 %v620
        %664 = vmatprep.subr.mxu0 0.0
        %665 = vmatpush1.msra.mxu0 %v621
        %666 = vmatprep.subr.mxu0 0.0
        %667 = vmatpush1.msra.mxu0 %v622
        %668 = vmatprep.subr.mxu0 0.0
        %669 = vmatpush1.msra.mxu0 %v623
        %670 = vmatprep.subr.mxu0 0.0
        %671 = vmatpush1.msra.mxu0 %v624
        %672 = vmatprep.subr.mxu0 0.0
        %673 = vmatpush1.msra.mxu0 %v625
        %674 = vmatprep.subr.mxu0 0.0
        %675 = vmatpush1.msra.mxu0 %v626
        %676 = vmatprep.subr.mxu0 0.0
        %677 = vmatpush1.msra.mxu0 %v627
        %678 = vmatprep.subr.mxu0 0.0
        %679 = vmatpush1.msra.mxu0 %v628
        %680 = vmatprep.subr.mxu0 0.0
        %681 = vmatpush1.msra.mxu0 %v629
        %682 = vmatprep.subr.mxu0 0.0
        %683 = vmatpush1.msra.mxu0 %v630
        %684 = vmatprep.subr.mxu0 0.0
        %685 = vmatpush1.msra.mxu0 %v631
        %686 = vmatprep.subr.mxu0 0.0
        %687 = vmatpush1.msra.mxu0 %v632
        %688 = vmatprep.subr.mxu0 0.0
        %689 = vmatpush1.msra.mxu0 %v633
        %690 = vmatprep.subr.mxu0 0.0
        %691 = vmatpush1.msra.mxu0 0.0
        %692 = vmatprep.subr.mxu0 0.0
        %693 = vmatpush1.msra.mxu0 0.0
        %694 = vmatprep.subr.mxu0 0.0
        %695 = vmatpush1.msra.mxu0 0.0
        %696 = vmatprep.subr.mxu0 0.0
        %697 = vmatpush1.msra.mxu0 0.0
        %698 = vmatprep.subr.mxu0 0.0
        %699 = vmatpush1.msra.mxu0 0.0
        %700 = vmatprep.subr.mxu0 0.0
        %701 = vmatpush1.msra.mxu0 0.0
        %702 = vmatprep.subr.mxu0 0.0
        %703 = vmatpush1.msra.mxu0 0.0
        %704 = vmatprep.subr.mxu0 0.0
        %705 = vmatpush1.msra.mxu0 0.0
        %706 = vmatprep.subr.mxu0 0.0
        %707 = vmatpush1.msra.mxu0 0.0
        %708 = vmatprep.subr.mxu0 0.0
        %709 = vmatpush1.msra.mxu0 0.0
        %710 = vmatprep.subr.mxu0 0.0
        %711 = vmatpush1.msra.mxu0 0.0
        %712 = vmatprep.subr.mxu0 0.0
        %713 = vmatpush1.msra.mxu0 0.0
        %714 = vmatprep.subr.mxu0 0.0
        %715 = vmatpush1.msra.mxu0 0.0
        %716 = vmatprep.subr.mxu0 0.0
        %717 = vmatpush1.msra.mxu0 0.0
        %718 = vmatprep.subr.mxu0 0.0
        %719 = vmatpush1.msra.mxu0 0.0
        %720 = vmatprep.subr.mxu0 0.0
        %721 = vmatpush1.msra.mxu0 0.0
        %722 = vmatprep.mubr.bf16.mxu0 0
        %723 = vmatmul.mubr.bf16.gmra.mrb[0].mxu0 %v650
        %v724 = vpop.f32.mrb[0].mxu0
        %v725 = vadd.f32 0.0, %v724
        %v726 = vpop.f32.mrb[0].mxu0
        %v727 = vpop.f32.mrb[0].mxu0
        %v728 = vadd.f32 0.0, %v727
        %v729 = vpop.f32.mrb[0].mxu0
        %730 = vmatprep.mubr.bf16.mxu0 0
        %731 = vmatmul.mubr.bf16.gmra.mrb[0].mxu0 %v651
        %v732 = vpop.f32.mrb[0].mxu0
        %v733 = vadd.f32 0.0, %v732
        %v734 = vpop.f32.mrb[0].mxu0
        %v735 = vpop.f32.mrb[0].mxu0
        %v736 = vadd.f32 0.0, %v735
        %v737 = vpop.f32.mrb[0].mxu0
        %738 = vmatprep.mubr.bf16.mxu0 0
        %739 = vmatmul.mubr.bf16.gmra.mrb[0].mxu0 %v652
        %v740 = vpop.f32.mrb[0].mxu0
        %v741 = vadd.f32 0.0, %v740
        %v742 = vpop.f32.mrb[0].mxu0
        %v743 = vpop.f32.mrb[0].mxu0
        %v744 = vadd.f32 0.0, %v743
        %v745 = vpop.f32.mrb[0].mxu0
        %746 = vmatprep.mubr.bf16.mxu0 0
        %747 = vmatmul.mubr.bf16.gmra.mrb[0].mxu0 %v653
        %v748 = vpop.f32.mrb[0].mxu0
        %v749 = vadd.f32 0.0, %v748
        %v750 = vpop.f32.mrb[0].mxu0
        %v751 = vpop.f32.mrb[0].mxu0
        %v752 = vadd.f32 0.0, %v751
        %v753 = vpop.f32.mrb[0].mxu0
        %754 = vdwg.mxu0
        %v755 = vadd.f32 %v602, %v725
        %v756 = vadd.f32 %v603, %v728
        %v757 = vadd.f32 %v604, %v733
        %v758 = vadd.f32 %v605, %v736
        %v759 = vadd.f32 %v606, %v741
        %v760 = vadd.f32 %v607, %v744
        %v761 = vadd.f32 %v608, %v749
        %v762 = vadd.f32 %v609, %v752
        %763 = vst [vmem:[#allocation2] sm:$0xff] %v755
        %764 = vst [vmem:[#allocation2 + $0x8] sm:$0xff] %v756
        %765 = vst [vmem:[#allocation2 + $0x10] sm:$0xff] %v757
        %766 = vst [vmem:[#allocation2 + $0x18] sm:$0xff] %v758
        %767 = vst [vmem:[#allocation2 + $0x20] sm:$0xff] %v759
        %768 = vst [vmem:[#allocation2 + $0x28] sm:$0xff] %v760
        %769 = vst [vmem:[#allocation2 + $0x30] sm:$0xff] %v761
        %770 = vst [vmem:[#allocation2 + $0x38] sm:$0xff] %v762
        // Predicated region
        $region77: #{graphsage_forward.4} parent=43 // pred_check
          %p771 = pneg %p426
        $region78: #{graphsage_forward.4} parent=43 // pred_check_branch
          %773 = sbr.rel (%p771) target = $region80
        $region79: #{graphsage_forward.4} parent=43 // pred_region
          %v774 = vld [vmem:[%s419] sm:$0xff]
          %v775 = vld [vmem:[%s419 + $0x8] sm:$0xff]
          %v776 = vld [vmem:[%s419 + $0x10] sm:$0xff]
          %v777 = vld [vmem:[%s419 + $0x18] sm:$0xff]
          %v778 = vld [vmem:[%s419 + $0x20] sm:$0xff]
          %v779 = vld [vmem:[%s419 + $0x28] sm:$0xff]
          %v780 = vld [vmem:[%s419 + $0x30] sm:$0xff]
          %v781 = vld [vmem:[%s419 + $0x38] sm:$0xff]
          %v782 = vld [vmem:[#allocation2] sm:$0xff]
          %v783 = vld [vmem:[#allocation2 + $0x8] sm:$0xff]
          %v784 = vld [vmem:[#allocation2 + $0x10] sm:$0xff]
          %v785 = vld [vmem:[#allocation2 + $0x18] sm:$0xff]
          %v786 = vld [vmem:[#allocation2 + $0x20] sm:$0xff]
          %v787 = vld [vmem:[#allocation2 + $0x28] sm:$0xff]
          %v788 = vld [vmem:[#allocation2 + $0x30] sm:$0xff]
          %v789 = vld [vmem:[#allocation2 + $0x38] sm:$0xff]
          %v790 = vld [vmem:[%s364] sm:$0xf]
          %v791 = vld [vmem:[%s364 + $0x4] sm:$0xf]
          %v792 = vld [vmem:[%s364 + $0x8] sm:$0xf]
          %v793 = vld [vmem:[%s364 + $0xc] sm:$0xf]
          %v794 = vld [vmem:[%s364 + $0x10] sm:$0xf]
          %v795 = vld [vmem:[%s364 + $0x14] sm:$0xf]
          %v796 = vld [vmem:[%s364 + $0x18] sm:$0xf]
          %v797 = vld [vmem:[%s364 + $0x1c] sm:$0xf]
          %v798 = vld [vmem:[%s364 + $0x20] sm:$0xf]
          %v799 = vld [vmem:[%s364 + $0x24] sm:$0xf]
          %v800 = vld [vmem:[%s364 + $0x28] sm:$0xf]
          %v801 = vld [vmem:[%s364 + $0x2c] sm:$0xf]
          %v802 = vld [vmem:[%s364 + $0x30] sm:$0xf]
          %v803 = vld [vmem:[%s364 + $0x34] sm:$0xf]
          %v804 = vld [vmem:[%s364 + $0x38] sm:$0xf]
          %v805 = vld [vmem:[%s364 + $0x3c] sm:$0xf]
          %v822 = vunpack.c.l.b16 %v790
          %v823 = vunpack.c.l.b16 %v791
          %v824 = vunpack.c.l.b16 %v792
          %v825 = vunpack.c.l.b16 %v793
          %v826 = vunpack.c.l.b16 %v794
          %v827 = vunpack.c.l.b16 %v795
          %v828 = vunpack.c.l.b16 %v796
          %v829 = vunpack.c.l.b16 %v797
          %v830 = vunpack.c.l.b16 %v798
          %v831 = vunpack.c.l.b16 %v799
          %v832 = vunpack.c.l.b16 %v800
          %v833 = vunpack.c.l.b16 %v801
          %v834 = vunpack.c.l.b16 %v802
          %v835 = vunpack.c.l.b16 %v803
          %v836 = vunpack.c.l.b16 %v804
          %v837 = vunpack.c.l.b16 %v805
          %v838 = vpack.c.b16 %v823, %v822
          %v839 = vpack.c.b16 %v825, %v824
          %v840 = vpack.c.b16 %v827, %v826
          %v841 = vpack.c.b16 %v829, %v828
          %v842 = vpack.c.b16 %v831, %v830
          %v843 = vpack.c.b16 %v833, %v832
          %v844 = vpack.c.b16 %v835, %v834
          %v845 = vpack.c.b16 %v837, %v836
          %854 = vmatprep.subr.bf16.mxu0 0
          %855 = vmatpush1.bf16.msra.mxu0 %v838
          %856 = vmatprep.subr.bf16.mxu0 0
          %857 = vmatpush1.bf16.msra.mxu0 %v839
          %858 = vmatprep.subr.bf16.mxu0 0
          %859 = vmatpush1.bf16.msra.mxu0 %v840
          %860 = vmatprep.subr.bf16.mxu0 0
          %861 = vmatpush1.bf16.msra.mxu0 %v841
          %862 = vmatprep.subr.bf16.mxu0 0
          %863 = vmatpush1.bf16.msra.mxu0 %v842
          %864 = vmatprep.subr.bf16.mxu0 0
          %865 = vmatpush1.bf16.msra.mxu0 %v843
          %866 = vmatprep.subr.bf16.mxu0 0
          %867 = vmatpush1.bf16.msra.mxu0 %v844
          %868 = vmatprep.subr.bf16.mxu0 0
          %869 = vmatpush1.bf16.msra.mxu0 %v845
          %870 = vmatprep.subr.bf16.mxu0 0
          %871 = vmatpush1.bf16.msra.mxu0 0
          %872 = vmatprep.subr.bf16.mxu0 0
          %873 = vmatpush1.bf16.msra.mxu0 0
          %874 = vmatprep.subr.bf16.mxu0 0
          %875 = vmatpush1.bf16.msra.mxu0 0
          %876 = vmatprep.subr.bf16.mxu0 0
          %877 = vmatpush1.bf16.msra.mxu0 0
          %878 = vmatprep.subr.bf16.mxu0 0
          %879 = vmatpush1.bf16.msra.mxu0 0
          %880 = vmatprep.subr.bf16.mxu0 0
          %881 = vmatpush1.bf16.msra.mxu0 0
          %882 = vmatprep.subr.bf16.mxu0 0
          %883 = vmatpush1.bf16.msra.mxu0 0
          %884 = vmatprep.subr.bf16.mxu0 0
          %885 = vmatpush1.bf16.msra.mxu0 0
          %886 = vmatprep.mubr.f32.mxu0 0.0
          %887 = vmatmul.mubr.f32.gmra.mrb[0].mxu0 %v782
          %v888 = vpop.f32.mrb[0].mxu0
          %v889 = vadd.f32 0.0, %v888
          %v890 = vpop.f32.mrb[0].mxu0
          %891 = vmatprep.mubr.f32.mxu0 0.0
          %892 = vmatmul.mubr.f32.gmra.mrb[0].mxu0 %v783
          %v893 = vpop.f32.mrb[0].mxu0
          %v894 = vadd.f32 0.0, %v893
          %v895 = vpop.f32.mrb[0].mxu0
          %896 = vmatprep.mubr.f32.mxu0 0.0
          %897 = vmatmul.mubr.f32.gmra.mrb[0].mxu0 %v784
          %v898 = vpop.f32.mrb[0].mxu0
          %v899 = vadd.f32 0.0, %v898
          %v900 = vpop.f32.mrb[0].mxu0
          %901 = vmatprep.mubr.f32.mxu0 0.0
          %902 = vmatmul.mubr.f32.gmra.mrb[0].mxu0 %v785
          %v903 = vpop.f32.mrb[0].mxu0
          %v904 = vadd.f32 0.0, %v903
          %v905 = vpop.f32.mrb[0].mxu0
          %906 = vmatprep.mubr.f32.mxu0 0.0
          %907 = vmatmul.mubr.f32.gmra.mrb[0].mxu0 %v786
          %v908 = vpop.f32.mrb[0].mxu0
          %v909 = vadd.f32 0.0, %v908
          %v910 = vpop.f32.mrb[0].mxu0
          %911 = vmatprep.mubr.f32.mxu0 0.0
          %912 = vmatmul.mubr.f32.gmra.mrb[0].mxu0 %v787
          %v913 = vpop.f32.mrb[0].mxu0
          %v914 = vadd.f32 0.0, %v913
          %v915 = vpop.f32.mrb[0].mxu0
          %916 = vmatprep.mubr.f32.mxu0 0.0
          %917 = vmatmul.mubr.f32.gmra.mrb[0].mxu0 %v788
          %v918 = vpop.f32.mrb[0].mxu0
          %v919 = vadd.f32 0.0, %v918
          %v920 = vpop.f32.mrb[0].mxu0
          %921 = vmatprep.mubr.f32.mxu0 0.0
          %922 = vmatmul.mubr.f32.gmra.mrb[0].mxu0 %v789
          %v923 = vpop.f32.mrb[0].mxu0
          %v924 = vadd.f32 0.0, %v923
          %v925 = vpop.f32.mrb[0].mxu0
          %926 = vdwg.mxu0
          %v927 = vadd.f32 %v774, %v889
          %v928 = vadd.f32 %v775, %v894
          %v929 = vadd.f32 %v776, %v899
          %v930 = vadd.f32 %v777, %v904
          %v931 = vadd.f32 %v778, %v909
          %v932 = vadd.f32 %v779, %v914
          %v933 = vadd.f32 %v780, %v919
          %v934 = vadd.f32 %v781, %v924
          %935 = vst [vmem:[%s419] sm:$0xff] %v927
          %936 = vst [vmem:[%s419 + $0x8] sm:$0xff] %v928
          %937 = vst [vmem:[%s419 + $0x10] sm:$0xff] %v929
          %938 = vst [vmem:[%s419 + $0x18] sm:$0xff] %v930
          %939 = vst [vmem:[%s419 + $0x20] sm:$0xff] %v931
          %940 = vst [vmem:[%s419 + $0x28] sm:$0xff] %v932
          %941 = vst [vmem:[%s419 + $0x30] sm:$0xff] %v933
          %942 = vst [vmem:[%s419 + $0x38] sm:$0xff] %v934
        $region80: #{graphsage_forward.4} parent=43 // pred_fallthru
          _
        %s943 = sand.u32 %s202, 1
        %s944 = scalar_lea.sflag [#allocation5], %s943
        %s945 = sand.u32 %s202, 1
        %s946 = smul.addr %s945, 64
        %s947 = scalar_lea.vmem [#allocation13], %s946
        // Predicated region
        $region81: #{graphsage_forward.4} parent=43 // pred_check
          %p948 = pneg %p212
        $region82: #{graphsage_forward.4} parent=43 // pred_check_branch
          %950 = sbr.rel (%p948) target = $region84
        $region83: #{graphsage_forward.4} parent=43 // pred_region
          %s951 = smul.u32 8, %s30
          %s953 = ssub.s32 1024, 1024
          %954 = vsyncadd %s944, %s953
          %s955 = smul.addr %s951, 128
          %s956 = scalar_lea.hbm %s6, %s955
          %s957 = sshll.u32 %s947, 4
          %s958 = int_to_ptr.vmem [resolvable:$true] %s957
          %963 = dma.vmem_to_hbm [thread:$0]  %s958, 1024, %s956, %s944, 128, 128, 8
        $region84: #{graphsage_forward.4} parent=43 // pred_fallthru
          _
      $region44: #{graphsage_forward.4} parent=5 // pred_fallthru
        _
      %p964 = scmp.le.s32.totalorder 2, %s20
      // Predicated region
      $region85: #{graphsage_forward.4} parent=5 // pred_check
        %p965 = pneg %p964
      $region86: #{graphsage_forward.4} parent=5 // pred_check_branch
        %967 = sbr.rel (%p965) target = $region88
      $region87: #{graphsage_forward.4} parent=5 // pred_region
        %s968 = ssub.s32 %s20, 2
        // Predicated region
        $region89: #{graphsage_forward.4} parent=87 // pred_check
          %p969 = pneg %p218
        $region90: #{graphsage_forward.4} parent=87 // pred_check_branch
          %971 = sbr.rel (%p969) target = $region92
        $region91: #{graphsage_forward.4} parent=87 // pred_region
          %s972 = sand.u32 %s203, 1
          %s973 = scalar_lea.sflag [#allocation5], %s972
          %s974 = sand.u32 %s203, 1
          %s975 = smul.addr %s974, 64
          %s976 = scalar_lea.vmem [#allocation13], %s975
          %977 = dma.done %s973, 1024
        $region92: #{graphsage_forward.4} parent=87 // pred_fallthru
          _
      $region88: #{graphsage_forward.4} parent=5 // pred_fallthru
        _
    $region6: #{graphsage_forward.4} parent=1 // loop_footer
      %s24 = sadd.s32 1, %s20
    $region7: #{graphsage_forward.4} parent=1 // loop_footer_branch
      %19 = sbr.rel target = $region3
    $region8: #{graphsage_forward.4} parent=1 // loop_exit
      _
    %978 = vsyncpa [#allocation4], 1
    %s979 = scalar_lea.sflag [#allocation4], 1
    %980 = vsyncpa %s979, 1
    %981 = vsyncpa [#allocation7], 1
    %982 = vsyncpa [#allocation12], 1
    %983 = vsyncpa [#allocation5], 1
    %s984 = scalar_lea.sflag [#allocation5], 1
    %985 = vsyncpa %s984, 1

// kernel: graphsage_forward.5
$region0: #{graphsage_forward.5}
  #allocation0 [shape = 'u32[]', space=smem, size = 0x4, offset = 0x4, fixed_abs, tag = 'smem constant byte address 0x4 - core index']
  #allocation1 [shape = 'u32[144,128]{1,0:T(1,128)}', space=vmem, size = 0x12000, scoped, tag = 'internal scratch']
  %s0 = inlined_call_operand.vmem [shape: f32[128,128], index: 0, kind: input, shape index: {}]
  %s1 = inlined_call_operand.vmem [shape: f32[128,128], index: 1, kind: input, shape index: {}]
  %s2 = inlined_call_operand.vmem [shape: f32[1,128], index: 2, kind: output, shape index: {}]
  %s3 = sld [smem:[#allocation0]]
  $region18: #{graphsage_forward.5} parent=0
    _
  %s5 = ssub.s32 1, %s3
  %s6 = scalar_select 0, %s5, %s3
  // Predicated region
  $region2: #{graphsage_forward.5} parent=0 // pred_check
    _
  $region3: #{graphsage_forward.5} parent=0 // pred_check_branch
    %8 = sbr.rel (0) target = $region5
  $region4: #{graphsage_forward.5} parent=0 // pred_region
    _
  $region5: #{graphsage_forward.5} parent=0 // pred_fallthru
    _
  // Predicated region
  $region6: #{graphsage_forward.5} parent=0 // pred_check
    _
  $region7: #{graphsage_forward.5} parent=0 // pred_check_branch
    %10 = sbr.rel (0) target = $region9
  $region8: #{graphsage_forward.5} parent=0 // pred_region
    _
  $region9: #{graphsage_forward.5} parent=0 // pred_fallthru
    _
  %v11 = vld [vmem:[%s0] sm:$0xff]
  %v12 = vld [vmem:[%s0 + $0x8] sm:$0xff]
  %v13 = vld [vmem:[%s0 + $0x10] sm:$0xff]
  %v14 = vld [vmem:[%s0 + $0x18] sm:$0xff]
  %v15 = vld [vmem:[%s0 + $0x20] sm:$0xff]
  %v16 = vld [vmem:[%s0 + $0x28] sm:$0xff]
  %v17 = vld [vmem:[%s0 + $0x30] sm:$0xff]
  %v18 = vld [vmem:[%s0 + $0x38] sm:$0xff]
  %v19 = vld [vmem:[%s0 + $0x40] sm:$0xff]
  %v20 = vld [vmem:[%s0 + $0x48] sm:$0xff]
  %v21 = vld [vmem:[%s0 + $0x50] sm:$0xff]
  %v22 = vld [vmem:[%s0 + $0x58] sm:$0xff]
  %v23 = vld [vmem:[%s0 + $0x60] sm:$0xff]
  %v24 = vld [vmem:[%s0 + $0x68] sm:$0xff]
  %v25 = vld [vmem:[%s0 + $0x70] sm:$0xff]
  %v26 = vld [vmem:[%s0 + $0x78] sm:$0xff]
  %v27 = vld [vmem:[%s1] sm:$0xff]
  %v28 = vld [vmem:[%s1 + $0x8] sm:$0xff]
  %v29 = vld [vmem:[%s1 + $0x10] sm:$0xff]
  %v30 = vld [vmem:[%s1 + $0x18] sm:$0xff]
  %v31 = vld [vmem:[%s1 + $0x20] sm:$0xff]
  %v32 = vld [vmem:[%s1 + $0x28] sm:$0xff]
  %v33 = vld [vmem:[%s1 + $0x30] sm:$0xff]
  %v34 = vld [vmem:[%s1 + $0x38] sm:$0xff]
  %v35 = vld [vmem:[%s1 + $0x40] sm:$0xff]
  %v36 = vld [vmem:[%s1 + $0x48] sm:$0xff]
  %v37 = vld [vmem:[%s1 + $0x50] sm:$0xff]
  %v38 = vld [vmem:[%s1 + $0x58] sm:$0xff]
  %v39 = vld [vmem:[%s1 + $0x60] sm:$0xff]
  %v40 = vld [vmem:[%s1 + $0x68] sm:$0xff]
  %v41 = vld [vmem:[%s1 + $0x70] sm:$0xff]
  %v42 = vld [vmem:[%s1 + $0x78] sm:$0xff]
  %v43 = vmul.f32 %v11, %v27
  %v44 = vmul.f32 %v12, %v28
  %v45 = vmul.f32 %v13, %v29
  %v46 = vmul.f32 %v14, %v30
  %v47 = vmul.f32 %v15, %v31
  %v48 = vmul.f32 %v16, %v32
  %v49 = vmul.f32 %v17, %v33
  %v50 = vmul.f32 %v18, %v34
  %v51 = vmul.f32 %v19, %v35
  %v52 = vmul.f32 %v20, %v36
  %v53 = vmul.f32 %v21, %v37
  %v54 = vmul.f32 %v22, %v38
  %v55 = vmul.f32 %v23, %v39
  %v56 = vmul.f32 %v24, %v40
  %v57 = vmul.f32 %v25, %v41
  %v58 = vmul.f32 %v26, %v42
  %v59 = vadd.f32 %v43, %v44
  %v60 = vadd.f32 %v59, %v45
  %v61 = vadd.f32 %v60, %v46
  %v62 = vadd.f32 %v61, %v47
  %v63 = vadd.f32 %v62, %v48
  %v64 = vadd.f32 %v63, %v49
  %v65 = vadd.f32 %v64, %v50
  %v66 = vadd.f32 %v65, %v51
  %v67 = vadd.f32 %v66, %v52
  %v68 = vadd.f32 %v67, %v53
  %v69 = vadd.f32 %v68, %v54
  %v70 = vadd.f32 %v69, %v55
  %v71 = vadd.f32 %v70, %v56
  %v72 = vadd.f32 %v71, %v57
  %v73 = vadd.f32 %v72, %v58
  %v74 = vrot.slane %v73, 4
  %v75 = vadd.f32 %v73, %v74
  %v76 = vrot.slane %v75, 2
  %v77 = vadd.f32 %v75, %v76
  %v78 = vrot.slane %v77, 1
  %v79 = vadd.f32 %v77, %v78
  %80 = vst [vmem:[%s2] sm:$0x1] %v79
  // Predicated region
  $region10: #{graphsage_forward.5} parent=0 // pred_check
    _
  $region11: #{graphsage_forward.5} parent=0 // pred_check_branch
    %82 = sbr.rel (0) target = $region13
  $region12: #{graphsage_forward.5} parent=0 // pred_region
    _
  $region13: #{graphsage_forward.5} parent=0 // pred_fallthru
    _
  // Predicated region
  $region14: #{graphsage_forward.5} parent=0 // pred_check
    _
  $region15: #{graphsage_forward.5} parent=0 // pred_check_branch
    %84 = sbr.rel (0) target = $region17
  $region16: #{graphsage_forward.5} parent=0 // pred_region
    _
  $region17: #{graphsage_forward.5} parent=0 // pred_fallthru
    _

</llo_original>
